<compile_context>
chip_gen: v7x
topology: tpu7x:2x2x1
jax: 0.10.0
libtpu: 0.0.40
codegen_flags: <defaults>
</compile_context>

<pallas_src>
import jax
import jax.numpy as jnp
from jax.experimental import pallas as pl
from jax.experimental.pallas import tpu as pltpu

# Model constants (cfg.model.classes := 10, cfg.input.size := (16, 16))
CIN = 3
COUT = 16
KH = KW = 3
CLASSES = 10

_TB_CANDIDATES = (2048, 1024, 512, 256, 128, 64, 32, 16, 8)


def _fakenet_kernel(x_ref, w_ref, b_ref, out_ref):
    # x_ref  : (TB, K)        flattened NCHW input block
    # w_ref  : (K, CLASSES)   folded conv+pool+linear weight (VMEM resident)
    # b_ref  : (1, CLASSES)   folded bias (VMEM resident)
    # out_ref: (TB, CLASSES)
    logits = jnp.dot(x_ref[...], w_ref[...],
                     preferred_element_type=jnp.float32,
                     precision=jax.lax.Precision.HIGHEST) + b_ref[...]
    # exact softmax over the class dim (divide is free: kernel is DMA-bound)
    m = jnp.max(logits, axis=-1, keepdims=True)
    e = jnp.exp(logits - m)
    out_ref[...] = (e / jnp.sum(e, axis=-1, keepdims=True)).astype(out_ref.dtype)


def fold_fakenet_params(wconv, bconv, wlin, blin, H, W):
    """Fold Conv2d(3,16,3,1,1) + AdaptiveAvgPool2d(1) + Linear(16,CLASSES) into a
    single (CIN*H*W, CLASSES) matrix + (1, CLASSES) bias. Exact (all ops linear).
    Call once per weight set (hoisted out of the per-forward jit)."""
    hh = jnp.arange(H)
    ww = jnp.arange(W)
    # tap kh touches input row r of the zero-padded conv iff the corresponding
    # output row stays in range: kh=0 -> r<=H-2, kh=1 -> always, kh=2 -> r>=1.
    row_valid = jnp.stack(
        [hh <= H - 2, jnp.ones(H, dtype=bool), hh >= 1]).astype(jnp.float32)  # (3,H)
    col_valid = jnp.stack(
        [ww <= W - 2, jnp.ones(W, dtype=bool), ww >= 1]).astype(jnp.float32)  # (3,W)
    # M[o, ci, h, w] = sum over valid (kh,kw) of wconv[o, ci, kh, kw]
    M = jnp.einsum('ocij,ih,jw->ochw', wconv, row_valid, col_valid)
    # fold the classifier and the 1/(H*W) pooling factor
    A = jnp.einsum('ko,ochw->chwk', wlin, M) / float(H * W)      # (CIN,H,W,CLASSES)
    A_flat = A.reshape(CIN * H * W, -1)                          # matches NCHW flatten
    b_fold = (blin + wlin @ bconv).reshape(1, -1)
    return A_flat, b_fold


def _pick_batch_tile(B):
    # Biggest tile that still leaves >= 2 grid steps (amortize per-step overhead,
    # keep both v7x TensorCores busy). Tiny batches get a single full-batch block
    # (block dim == full array dim satisfies the (8,128) rule).
    if B <= 8:
        return B
    for tb in _TB_CANDIDATES:
        if B > tb:              # => pl.cdiv(B, tb) >= 2 grid steps
            return tb
    return B


@jax.jit
def fakenet_forward(x_nchw, w_fold, b_fold):
    """x_nchw: (B, 3, H, W); w_fold: (3*H*W, classes); b_fold: (1, classes)."""
    B, cin, H, W = x_nchw.shape
    K = cin * H * W
    classes = w_fold.shape[1]
    assert w_fold.shape[0] == K

    # Free, contiguous reshape: no HBM data movement for the activations.
    x_flat = x_nchw.reshape(B, K)
    # Follow the activation dtype (bf16 x => bf16 weights, f32 accumulation).
    if w_fold.dtype != x_flat.dtype:
        w_fold = w_fold.astype(x_flat.dtype)

    TB = _pick_batch_tile(B)
    grid = (pl.cdiv(B, TB),)    # ragged last block is masked by Pallas

    # Size the scoped VMEM limit from the double-buffered tiles (+2x headroom).
    itemsize = x_flat.dtype.itemsize
    vmem_needed = (2 * TB * K * itemsize          # x double buffer
                   + 2 * TB * classes * 4         # out double buffer
                   + (K + 1) * classes * itemsize)
    vmem_limit = int(min(56 << 20, max(32 << 20, 2 * vmem_needed)))

    cost = pl.CostEstimate(
        flops=2 * B * K * classes,
        transcendentals=B * classes,
        bytes_accessed=(B * K * itemsize + B * classes * 4
                        + (K + 1) * classes * itemsize),
    )

    return pl.pallas_call(
        _fakenet_kernel,
        out_shape=jax.ShapeDtypeStruct((B, classes), jnp.float32),
        grid=grid,
        in_specs=[
            pl.BlockSpec((TB, K), lambda i: (i, 0)),
            pl.BlockSpec((K, classes), lambda i: (0, 0)),   # VMEM resident
            pl.BlockSpec((1, classes), lambda i: (0, 0)),   # VMEM resident
        ],
        out_specs=pl.BlockSpec((TB, classes), lambda i: (i, 0)),
        compiler_params=pltpu.CompilerParams(
            dimension_semantics=("parallel",),
            vmem_limit_bytes=vmem_limit),
        cost_estimate=cost,
    )(x_flat, w_fold, b_fold)


def _reference_forward(x_nchw, wconv, bconv, wlin, blin):
    """Pure-JAX reference (mirrors the PyTorch forward) for a sanity check."""
    conv = jax.lax.conv_general_dilated(
        x_nchw, wconv, window_strides=(1, 1), padding=((1, 1), (1, 1)),
        dimension_numbers=("NCHW", "OIHW", "NCHW"),
        precision=jax.lax.Precision.HIGHEST)
    conv = conv + bconv[None, :, None, None]
    pooled = jnp.mean(conv, axis=(2, 3))                             # (B, COUT)
    logits = jnp.dot(pooled, wlin.T,
                     precision=jax.lax.Precision.HIGHEST) + blin[None, :]
    return jax.nn.softmax(logits, axis=1)


if __name__ == "__main__":
    B, H, W = 2, 16, 16
    key = jax.random.PRNGKey(0)
    k1, k2, k3, k4, k5 = jax.random.split(key, 5)

    # Deterministic synthetic parameters (torch layouts).
    wconv = jax.random.normal(k1, (COUT, CIN, KH, KW), jnp.float32) * 0.1
    bconv = jax.random.normal(k2, (COUT,), jnp.float32) * 0.1
    wlin = jax.random.normal(k3, (CLASSES, COUT), jnp.float32) * 0.1
    blin = jax.random.normal(k4, (CLASSES,), jnp.float32) * 0.1

    x = jax.random.normal(k5, (B, CIN, H, W), jnp.float32)           # NCHW input

    # Fold once per weight set (hoisted out of the per-call path), then run.
    w_fold, b_fold = fold_fakenet_params(wconv, bconv, wlin, blin, H, W)
    out = jax.block_until_ready(fakenet_forward(x, w_fold, b_fold))
    ref = jax.block_until_ready(_reference_forward(x, wconv, bconv, wlin, blin))

    assert out.shape == (B, CLASSES)
    assert bool(jnp.all(jnp.isfinite(out)))
    assert bool(jnp.allclose(jnp.sum(out, axis=-1), 1.0, atol=1e-5))
    assert bool(jnp.allclose(out, ref, rtol=1e-3, atol=1e-5))

    print("KERNEL_OK")
</pallas_src>

<mosaic_0001>
module attributes {stable_mosaic.version = 11 : i64} {
  func.func @_fakenet_kernel(%arg0: i32, %arg1: memref<2x768xf32, #tpu.memory_space<vmem>>, %arg2: memref<768x10xf32, #tpu.memory_space<vmem>>, %arg3: memref<1x10xf32, #tpu.memory_space<vmem>>, %arg4: memref<2x10xf32, #tpu.memory_space<vmem>>) attributes {dimension_semantics = [#tpu.dimension_semantics<parallel>], iteration_bounds = array<i64: 1>, scalar_prefetch = 0 : i64, scratch_operands = 0 : i64, tpu.core_type = #tpu.core_type<tc>, window_params = [{transform_indices = @transform_0, window_bounds = array<i64: 2, 768>}, {pipeline_mode = #tpu.pipeline_mode<synchronous>, transform_indices = @transform_1, window_bounds = array<i64: 768, 10>}, {pipeline_mode = #tpu.pipeline_mode<synchronous>, transform_indices = @transform_2, window_bounds = array<i64: 1, 10>}, {transform_indices = @transform_3, window_bounds = array<i64: 2, 10>}]} {
    %c0 = arith.constant 0 : index
    %c0_0 = arith.constant 0 : index
    %0 = vector.load %arg1[%c0, %c0_0] : memref<2x768xf32, #tpu.memory_space<vmem>>, vector<2x768xf32>
    %c0_1 = arith.constant 0 : index
    %c0_2 = arith.constant 0 : index
    %1 = vector.load %arg2[%c0_1, %c0_2] : memref<768x10xf32, #tpu.memory_space<vmem>>, vector<768x10xf32>
    %cst = arith.constant dense<0.000000e+00> : vector<2x10xf32>
    %2 = tpu.matmul %0, %1, %cst {dimension_numbers = #tpu.dot_dimension_numbers<[1], [0], [0], [1], [0, 0, 1, 1], [], []>, precision = #tpu.contract_precision<fp32>} : vector<2x768xf32>, vector<768x10xf32>, vector<2x10xf32> -> vector<2x10xf32>
    %c0_3 = arith.constant 0 : index
    %c0_4 = arith.constant 0 : index
    %3 = vector.load %arg3[%c0_3, %c0_4] : memref<1x10xf32, #tpu.memory_space<vmem>>, vector<1x10xf32>
    %4 = vector.broadcast %3 : vector<1x10xf32> to vector<2x10xf32>
    %5 = arith.addf %2, %4 : vector<2x10xf32>
    %cst_5 = arith.constant dense<0xFF800000> : vector<2xf32>
    %6 = vector.multi_reduction <maximumf>, %5, %cst_5 [1] : vector<2x10xf32> to vector<2xf32>
    %7 = vector.shape_cast %6 : vector<2xf32> to vector<2x1xf32>
    %8 = vector.broadcast %7 : vector<2x1xf32> to vector<2x10xf32>
    %9 = arith.subf %5, %8 : vector<2x10xf32>
    %10 = math.exp %9 : vector<2x10xf32>
    %cst_6 = arith.constant dense<0.000000e+00> : vector<2xf32>
    %11 = vector.multi_reduction <add>, %10, %cst_6 [1] : vector<2x10xf32> to vector<2xf32>
    %12 = vector.shape_cast %11 : vector<2xf32> to vector<2x1xf32>
    %13 = vector.broadcast %12 : vector<2x1xf32> to vector<2x10xf32>
    %14 = arith.divf %10, %13 : vector<2x10xf32>
    %c0_7 = arith.constant 0 : index
    %c0_8 = arith.constant 0 : index
    %15 = vector.load %arg4[%c0_7, %c0_8] : memref<2x10xf32, #tpu.memory_space<vmem>>, vector<2x10xf32>
    tpu.vector_store %arg4[%c0_7, %c0_8], %14 {strides = array<i32>} : memref<2x10xf32, #tpu.memory_space<vmem>>, vector<2x10xf32>,
    return
  }
  func.func @transform_0(%arg0: i32) -> (i32, i32) {
    %c0_i32 = arith.constant 0 : i32
    %c0_i32_0 = arith.constant 0 : i32
    return %arg0, %c0_i32 : i32, i32
  }
  func.func @transform_1(%arg0: i32) -> (i32, i32) {
    %c0_i32 = arith.constant 0 : i32
    %c0_i32_0 = arith.constant 0 : i32
    %c0_i32_1 = arith.constant 0 : i32
    return %c0_i32, %c0_i32_0 : i32, i32
  }
  func.func @transform_2(%arg0: i32) -> (i32, i32) {
    %c0_i32 = arith.constant 0 : i32
    %c0_i32_0 = arith.constant 0 : i32
    %c0_i32_1 = arith.constant 0 : i32
    return %c0_i32, %c0_i32_0 : i32, i32
  }
  func.func @transform_3(%arg0: i32) -> (i32, i32) {
    %c0_i32 = arith.constant 0 : i32
    %c0_i32_0 = arith.constant 0 : i32
    return %arg0, %c0_i32 : i32, i32
  }
}

</mosaic_0001>

<llo_original>
// kernel: fakenet_forward.1
$region0: #{fakenet_forward.1}
  #allocation0 [shape = 'u32[]', space=smem, size = 0x4, offset = 0x4, fixed_abs, tag = 'smem constant byte address 0x4 - core index']
  #allocation1 [shape = 'u32[144,128]{1,0:T(1,128)}', space=vmem, size = 0x12000, scoped, tag = 'internal scratch']
  %s0 = inlined_call_operand.vmem [shape: f32[2,768], index: 0, kind: input, shape index: {}]
  %s1 = inlined_call_operand.vmem [shape: f32[768,10], index: 1, kind: input, shape index: {}]
  %s2 = inlined_call_operand.vmem [shape: f32[1,10], index: 2, kind: input, shape index: {}]
  %s3 = inlined_call_operand.hbm [shape: f32[2,10], index: 3, kind: output, shape index: {}]
  %s4 = sld [smem:[#allocation0]]
  $region22: #{fakenet_forward.1} parent=0
    _
  %s6 = ssub.s32 1, %s4
  %s7 = scalar_select 0, %s6, %s4
  $region1: #{fakenet_forward.1} parent=0
    #allocation2 [shape = 'u8[1024]{0}', space=vmem, size = 0x400, scoped, tag = 'output window, operand 0, single buffered']
    #allocation3 [shape = 's32[1]{0}', space=sflag, size = 0x4, scoped, tag = 'scoped memory for fakenet_forward.1']
    %8 = vsyncpa [#allocation3], 0
    // Predicated region
    $region2: #{fakenet_forward.1} parent=1 // pred_check
      _
    $region3: #{fakenet_forward.1} parent=1 // pred_check_branch
      %10 = sbr.rel (0) target = $region5
    $region4: #{fakenet_forward.1} parent=1 // pred_region
      _
    $region5: #{fakenet_forward.1} parent=1 // pred_fallthru
      _
    // Predicated region
    $region6: #{fakenet_forward.1} parent=1 // pred_check
      _
    $region7: #{fakenet_forward.1} parent=1 // pred_check_branch
      %12 = sbr.rel (0) target = $region9
    $region8: #{fakenet_forward.1} parent=1 // pred_region
      _
    $region9: #{fakenet_forward.1} parent=1 // pred_fallthru
      _
    // Predicated region
    $region10: #{fakenet_forward.1} parent=1 // pred_check
      _
    $region11: #{fakenet_forward.1} parent=1 // pred_check_branch
      %14 = sbr.rel (0) target = $region13
    $region12: #{fakenet_forward.1} parent=1 // pred_region
      _
    $region13: #{fakenet_forward.1} parent=1 // pred_fallthru
      _
    %v15 = vld [vmem:[%s0] sm:$0xff]
    %v16 = vld [vmem:[%s0 + $0x8] sm:$0xf]
    %v17 = vld [vmem:[%s1] sm:$0xff]
    %v18 = vld [vmem:[%s1 + $0x8] sm:$0xff]
    %v19 = vld [vmem:[%s1 + $0x10] sm:$0xff]
    %v20 = vld [vmem:[%s1 + $0x18] sm:$0xff]
    %v21 = vld [vmem:[%s1 + $0x20] sm:$0xff]
    %v22 = vld [vmem:[%s1 + $0x28] sm:$0xff]
    %v23 = vld [vmem:[%s1 + $0x30] sm:$0xff]
    %v24 = vld [vmem:[%s1 + $0x38] sm:$0xff]
    %v25 = vld [vmem:[%s1 + $0x40] sm:$0xff]
    %v26 = vld [vmem:[%s1 + $0x48] sm:$0xff]
    %v27 = vld [vmem:[%s1 + $0x50] sm:$0xff]
    %v28 = vld [vmem:[%s1 + $0x58] sm:$0xff]
    %v29 = vld [vmem:[%s1 + $0x60] sm:$0xff]
    %v30 = vld [vmem:[%s1 + $0x68] sm:$0xff]
    %v31 = vld [vmem:[%s1 + $0x70] sm:$0xff]
    %v32 = vld [vmem:[%s1 + $0x78] sm:$0xff]
    %v33 = vld [vmem:[%s1 + $0x80] sm:$0xff]
    %v34 = vld [vmem:[%s1 + $0x88] sm:$0xff]
    %v35 = vld [vmem:[%s1 + $0x90] sm:$0xff]
    %v36 = vld [vmem:[%s1 + $0x98] sm:$0xff]
    %v37 = vld [vmem:[%s1 + $0xa0] sm:$0xff]
    %v38 = vld [vmem:[%s1 + $0xa8] sm:$0xff]
    %v39 = vld [vmem:[%s1 + $0xb0] sm:$0xff]
    %v40 = vld [vmem:[%s1 + $0xb8] sm:$0xff]
    %v41 = vld [vmem:[%s1 + $0xc0] sm:$0xff]
    %v42 = vld [vmem:[%s1 + $0xc8] sm:$0xff]
    %v43 = vld [vmem:[%s1 + $0xd0] sm:$0xff]
    %v44 = vld [vmem:[%s1 + $0xd8] sm:$0xff]
    %v45 = vld [vmem:[%s1 + $0xe0] sm:$0xff]
    %v46 = vld [vmem:[%s1 + $0xe8] sm:$0xff]
    %v47 = vld [vmem:[%s1 + $0xf0] sm:$0xff]
    %v48 = vld [vmem:[%s1 + $0xf8] sm:$0xff]
    %v49 = vld [vmem:[%s1 + $0x100] sm:$0xff]
    %v50 = vld [vmem:[%s1 + $0x108] sm:$0xff]
    %v51 = vld [vmem:[%s1 + $0x110] sm:$0xff]
    %v52 = vld [vmem:[%s1 + $0x118] sm:$0xff]
    %v53 = vld [vmem:[%s1 + $0x120] sm:$0xff]
    %v54 = vld [vmem:[%s1 + $0x128] sm:$0xff]
    %v55 = vld [vmem:[%s1 + $0x130] sm:$0xff]
    %v56 = vld [vmem:[%s1 + $0x138] sm:$0xff]
    %v57 = vld [vmem:[%s1 + $0x140] sm:$0xff]
    %v58 = vld [vmem:[%s1 + $0x148] sm:$0xff]
    %v59 = vld [vmem:[%s1 + $0x150] sm:$0xff]
    %v60 = vld [vmem:[%s1 + $0x158] sm:$0xff]
    %v61 = vld [vmem:[%s1 + $0x160] sm:$0xff]
    %v62 = vld [vmem:[%s1 + $0x168] sm:$0xff]
    %v63 = vld [vmem:[%s1 + $0x170] sm:$0xff]
    %v64 = vld [vmem:[%s1 + $0x178] sm:$0xff]
    %v65 = vld [vmem:[%s1 + $0x180] sm:$0xff]
    %v66 = vld [vmem:[%s1 + $0x188] sm:$0xff]
    %v67 = vld [vmem:[%s1 + $0x190] sm:$0xff]
    %v68 = vld [vmem:[%s1 + $0x198] sm:$0xff]
    %v69 = vld [vmem:[%s1 + $0x1a0] sm:$0xff]
    %v70 = vld [vmem:[%s1 + $0x1a8] sm:$0xff]
    %v71 = vld [vmem:[%s1 + $0x1b0] sm:$0xff]
    %v72 = vld [vmem:[%s1 + $0x1b8] sm:$0xff]
    %v73 = vld [vmem:[%s1 + $0x1c0] sm:$0xff]
    %v74 = vld [vmem:[%s1 + $0x1c8] sm:$0xff]
    %v75 = vld [vmem:[%s1 + $0x1d0] sm:$0xff]
    %v76 = vld [vmem:[%s1 + $0x1d8] sm:$0xff]
    %v77 = vld [vmem:[%s1 + $0x1e0] sm:$0xff]
    %v78 = vld [vmem:[%s1 + $0x1e8] sm:$0xff]
    %v79 = vld [vmem:[%s1 + $0x1f0] sm:$0xff]
    %v80 = vld [vmem:[%s1 + $0x1f8] sm:$0xff]
    %v81 = vld [vmem:[%s1 + $0x200] sm:$0xff]
    %v82 = vld [vmem:[%s1 + $0x208] sm:$0xff]
    %v83 = vld [vmem:[%s1 + $0x210] sm:$0xff]
    %v84 = vld [vmem:[%s1 + $0x218] sm:$0xff]
    %v85 = vld [vmem:[%s1 + $0x220] sm:$0xff]
    %v86 = vld [vmem:[%s1 + $0x228] sm:$0xff]
    %v87 = vld [vmem:[%s1 + $0x230] sm:$0xff]
    %v88 = vld [vmem:[%s1 + $0x238] sm:$0xff]
    %v89 = vld [vmem:[%s1 + $0x240] sm:$0xff]
    %v90 = vld [vmem:[%s1 + $0x248] sm:$0xff]
    %v91 = vld [vmem:[%s1 + $0x250] sm:$0xff]
    %v92 = vld [vmem:[%s1 + $0x258] sm:$0xff]
    %v93 = vld [vmem:[%s1 + $0x260] sm:$0xff]
    %v94 = vld [vmem:[%s1 + $0x268] sm:$0xff]
    %v95 = vld [vmem:[%s1 + $0x270] sm:$0xff]
    %v96 = vld [vmem:[%s1 + $0x278] sm:$0xff]
    %v97 = vld [vmem:[%s1 + $0x280] sm:$0xff]
    %v98 = vld [vmem:[%s1 + $0x288] sm:$0xff]
    %v99 = vld [vmem:[%s1 + $0x290] sm:$0xff]
    %v100 = vld [vmem:[%s1 + $0x298] sm:$0xff]
    %v101 = vld [vmem:[%s1 + $0x2a0] sm:$0xff]
    %v102 = vld [vmem:[%s1 + $0x2a8] sm:$0xff]
    %v103 = vld [vmem:[%s1 + $0x2b0] sm:$0xff]
    %v104 = vld [vmem:[%s1 + $0x2b8] sm:$0xff]
    %v105 = vld [vmem:[%s1 + $0x2c0] sm:$0xff]
    %v106 = vld [vmem:[%s1 + $0x2c8] sm:$0xff]
    %v107 = vld [vmem:[%s1 + $0x2d0] sm:$0xff]
    %v108 = vld [vmem:[%s1 + $0x2d8] sm:$0xff]
    %v109 = vld [vmem:[%s1 + $0x2e0] sm:$0xff]
    %v110 = vld [vmem:[%s1 + $0x2e8] sm:$0xff]
    %v111 = vld [vmem:[%s1 + $0x2f0] sm:$0xff]
    %v112 = vld [vmem:[%s1 + $0x2f8] sm:$0xff]
    %v113 = vld [vmem:[%s2] sm:$0x1]
    %v115 = vlaneseq
    %v116 = vshrl.u32 %v115, 7
    %v117 = vsub.s32 0, %v116
    %v118 = vrot.slane %v113, %v117
    %v122 = vcombine.high %v15, %v15
    %v124 = vunpack.c.l.s4 1983009808
    %v125 = vunpack.c.0.s8 %v124
    %v126 = vlaneseq
    %v127 = vshrl.u32 %v126, 7
    %v128 = vsub.s32 %v125, %v127
    %v129 = vrot.slane %v15, %v128
    %v131 = vunpack.c.l.s4 1983009808
    %v132 = vunpack.c.0.s8 %v131
    %v133 = vlaneseq
    %v134 = vshrl.u32 %v133, 7
    %v135 = vsub.s32 %v132, %v134
    %v136 = vrot.slane %v122, %v135
    %v137 = vcombine.high %v129, %v129
    %v138 = vcombine.high %v136, %v136
    %v140 = vunpack.c.l.s4 1983009808
    %v141 = vunpack.c.0.s8 %v140
    %v142 = vlaneseq
    %v143 = vshrl.u32 %v142, 7
    %v144 = vsub.s32 %v141, %v143
    %v145 = vrot.slane %v16, %v144
    %v146 = vcombine.high %v145, %v145
    %153 = vmatprep.subr.mxu0 0.0
    %v154 = vand.u32 %v17, 4294901760
    %155 = vmatpush1.msra.mxu0 %v154
    %156 = vmatprep.subr.mxu0 0.0
    %v157 = vand.u32 %v18, 4294901760
    %158 = vmatpush1.msra.mxu0 %v157
    %159 = vmatprep.subr.mxu0 0.0
    %v160 = vand.u32 %v19, 4294901760
    %161 = vmatpush1.msra.mxu0 %v160
    %162 = vmatprep.subr.mxu0 0.0
    %v163 = vand.u32 %v20, 4294901760
    %164 = vmatpush1.msra.mxu0 %v163
    %165 = vmatprep.subr.mxu0 0.0
    %v166 = vand.u32 %v21, 4294901760
    %167 = vmatpush1.msra.mxu0 %v166
    %168 = vmatprep.subr.mxu0 0.0
    %v169 = vand.u32 %v22, 4294901760
    %170 = vmatpush1.msra.mxu0 %v169
    %171 = vmatprep.subr.mxu0 0.0
    %v172 = vand.u32 %v23, 4294901760
    %173 = vmatpush1.msra.mxu0 %v172
    %174 = vmatprep.subr.mxu0 0.0
    %v175 = vand.u32 %v24, 4294901760
    %176 = vmatpush1.msra.mxu0 %v175
    %177 = vmatprep.subr.mxu0 0.0
    %v178 = vand.u32 %v25, 4294901760
    %179 = vmatpush1.msra.mxu0 %v178
    %180 = vmatprep.subr.mxu0 0.0
    %v181 = vand.u32 %v26, 4294901760
    %182 = vmatpush1.msra.mxu0 %v181
    %183 = vmatprep.subr.mxu0 0.0
    %v184 = vand.u32 %v27, 4294901760
    %185 = vmatpush1.msra.mxu0 %v184
    %186 = vmatprep.subr.mxu0 0.0
    %v187 = vand.u32 %v28, 4294901760
    %188 = vmatpush1.msra.mxu0 %v187
    %189 = vmatprep.subr.mxu0 0.0
    %v190 = vand.u32 %v29, 4294901760
    %191 = vmatpush1.msra.mxu0 %v190
    %192 = vmatprep.subr.mxu0 0.0
    %v193 = vand.u32 %v30, 4294901760
    %194 = vmatpush1.msra.mxu0 %v193
    %195 = vmatprep.subr.mxu0 0.0
    %v196 = vand.u32 %v31, 4294901760
    %197 = vmatpush1.msra.mxu0 %v196
    %198 = vmatprep.subr.mxu0 0.0
    %v199 = vand.u32 %v32, 4294901760
    %200 = vmatpush1.msra.mxu0 %v199
    %201 = vmatprep.subr.mxu0 0.0
    %v202 = vand.u32 %v33, 4294901760
    %203 = vmatpush1.msra.mxu0 %v202
    %204 = vmatprep.subr.mxu0 0.0
    %v205 = vand.u32 %v34, 4294901760
    %206 = vmatpush1.msra.mxu0 %v205
    %207 = vmatprep.subr.mxu0 0.0
    %v208 = vand.u32 %v35, 4294901760
    %209 = vmatpush1.msra.mxu0 %v208
    %210 = vmatprep.subr.mxu0 0.0
    %v211 = vand.u32 %v36, 4294901760
    %212 = vmatpush1.msra.mxu0 %v211
    %213 = vmatprep.subr.mxu0 0.0
    %v214 = vand.u32 %v37, 4294901760
    %215 = vmatpush1.msra.mxu0 %v214
    %216 = vmatprep.subr.mxu0 0.0
    %v217 = vand.u32 %v38, 4294901760
    %218 = vmatpush1.msra.mxu0 %v217
    %219 = vmatprep.subr.mxu0 0.0
    %v220 = vand.u32 %v39, 4294901760
    %221 = vmatpush1.msra.mxu0 %v220
    %222 = vmatprep.subr.mxu0 0.0
    %v223 = vand.u32 %v40, 4294901760
    %224 = vmatpush1.msra.mxu0 %v223
    %225 = vmatprep.subr.mxu0 0.0
    %v226 = vand.u32 %v41, 4294901760
    %227 = vmatpush1.msra.mxu0 %v226
    %228 = vmatprep.subr.mxu0 0.0
    %v229 = vand.u32 %v42, 4294901760
    %230 = vmatpush1.msra.mxu0 %v229
    %231 = vmatprep.subr.mxu0 0.0
    %v232 = vand.u32 %v43, 4294901760
    %233 = vmatpush1.msra.mxu0 %v232
    %234 = vmatprep.subr.mxu0 0.0
    %v235 = vand.u32 %v44, 4294901760
    %236 = vmatpush1.msra.mxu0 %v235
    %237 = vmatprep.subr.mxu0 0.0
    %v238 = vand.u32 %v45, 4294901760
    %239 = vmatpush1.msra.mxu0 %v238
    %240 = vmatprep.subr.mxu0 0.0
    %v241 = vand.u32 %v46, 4294901760
    %242 = vmatpush1.msra.mxu0 %v241
    %243 = vmatprep.subr.mxu0 0.0
    %v244 = vand.u32 %v47, 4294901760
    %245 = vmatpush1.msra.mxu0 %v244
    %246 = vmatprep.subr.mxu0 0.0
    %v247 = vand.u32 %v48, 4294901760
    %248 = vmatpush1.msra.mxu0 %v247
    %v249 = vand.u32 %v137, 4294901760
    %v250 = vsub.f32 %v137, %v249
    %v251 = vand.u32 %v250, 4294901760
    %v252 = vsub.f32 %v250, %v251
    %v253 = vand.u32 %v252, 4294901760
    %254 = vmatprep.mubr.f32.mxu0 %v253
    %v255 = vand.u32 %v129, 4294901760
    %v256 = vsub.f32 %v129, %v255
    %v257 = vand.u32 %v256, 4294901760
    %v258 = vsub.f32 %v256, %v257
    %v259 = vand.u32 %v258, 4294901760
    %260 = vmatmul.mubr.f32.gmra.mrb[0].mxu0 %v259
    %v261 = vpop.f32.mrb[0].mxu0
    %v262 = vadd.f32 %v118, %v261
    %v263 = vpop.f32.mrb[0].mxu0
    %264 = vdwg.mxu0
    %265 = vmatprep.subr.mxu0 0.0
    %v266 = vand.u32 %v17, 4294901760
    %v267 = vsub.f32 %v17, %v266
    %v268 = vand.u32 %v267, 4294901760
    %v269 = vsub.f32 %v267, %v268
    %v270 = vand.u32 %v269, 4294901760
    %271 = vmatpush1.msra.mxu0 %v270
    %272 = vmatprep.subr.mxu0 0.0
    %v273 = vand.u32 %v18, 4294901760
    %v274 = vsub.f32 %v18, %v273
    %v275 = vand.u32 %v274, 4294901760
    %v276 = vsub.f32 %v274, %v275
    %v277 = vand.u32 %v276, 4294901760
    %278 = vmatpush1.msra.mxu0 %v277
    %279 = vmatprep.subr.mxu0 0.0
    %v280 = vand.u32 %v19, 4294901760
    %v281 = vsub.f32 %v19, %v280
    %v282 = vand.u32 %v281, 4294901760
    %v283 = vsub.f32 %v281, %v282
    %v284 = vand.u32 %v283, 4294901760
    %285 = vmatpush1.msra.mxu0 %v284
    %286 = vmatprep.subr.mxu0 0.0
    %v287 = vand.u32 %v20, 4294901760
    %v288 = vsub.f32 %v20, %v287
    %v289 = vand.u32 %v288, 4294901760
    %v290 = vsub.f32 %v288, %v289
    %v291 = vand.u32 %v290, 4294901760
    %292 = vmatpush1.msra.mxu0 %v291
    %293 = vmatprep.subr.mxu0 0.0
    %v294 = vand.u32 %v21, 4294901760
    %v295 = vsub.f32 %v21, %v294
    %v296 = vand.u32 %v295, 4294901760
    %v297 = vsub.f32 %v295, %v296
    %v298 = vand.u32 %v297, 4294901760
    %299 = vmatpush1.msra.mxu0 %v298
    %300 = vmatprep.subr.mxu0 0.0
    %v301 = vand.u32 %v22, 4294901760
    %v302 = vsub.f32 %v22, %v301
    %v303 = vand.u32 %v302, 4294901760
    %v304 = vsub.f32 %v302, %v303
    %v305 = vand.u32 %v304, 4294901760
    %306 = vmatpush1.msra.mxu0 %v305
    %307 = vmatprep.subr.mxu0 0.0
    %v308 = vand.u32 %v23, 4294901760
    %v309 = vsub.f32 %v23, %v308
    %v310 = vand.u32 %v309, 4294901760
    %v311 = vsub.f32 %v309, %v310
    %v312 = vand.u32 %v311, 4294901760
    %313 = vmatpush1.msra.mxu0 %v312
    %314 = vmatprep.subr.mxu0 0.0
    %v315 = vand.u32 %v24, 4294901760
    %v316 = vsub.f32 %v24, %v315
    %v317 = vand.u32 %v316, 4294901760
    %v318 = vsub.f32 %v316, %v317
    %v319 = vand.u32 %v318, 4294901760
    %320 = vmatpush1.msra.mxu0 %v319
    %321 = vmatprep.subr.mxu0 0.0
    %v322 = vand.u32 %v25, 4294901760
    %v323 = vsub.f32 %v25, %v322
    %v324 = vand.u32 %v323, 4294901760
    %v325 = vsub.f32 %v323, %v324
    %v326 = vand.u32 %v325, 4294901760
    %327 = vmatpush1.msra.mxu0 %v326
    %328 = vmatprep.subr.mxu0 0.0
    %v329 = vand.u32 %v26, 4294901760
    %v330 = vsub.f32 %v26, %v329
    %v331 = vand.u32 %v330, 4294901760
    %v332 = vsub.f32 %v330, %v331
    %v333 = vand.u32 %v332, 4294901760
    %334 = vmatpush1.msra.mxu0 %v333
    %335 = vmatprep.subr.mxu0 0.0
    %v336 = vand.u32 %v27, 4294901760
    %v337 = vsub.f32 %v27, %v336
    %v338 = vand.u32 %v337, 4294901760
    %v339 = vsub.f32 %v337, %v338
    %v340 = vand.u32 %v339, 4294901760
    %341 = vmatpush1.msra.mxu0 %v340
    %342 = vmatprep.subr.mxu0 0.0
    %v343 = vand.u32 %v28, 4294901760
    %v344 = vsub.f32 %v28, %v343
    %v345 = vand.u32 %v344, 4294901760
    %v346 = vsub.f32 %v344, %v345
    %v347 = vand.u32 %v346, 4294901760
    %348 = vmatpush1.msra.mxu0 %v347
    %349 = vmatprep.subr.mxu0 0.0
    %v350 = vand.u32 %v29, 4294901760
    %v351 = vsub.f32 %v29, %v350
    %v352 = vand.u32 %v351, 4294901760
    %v353 = vsub.f32 %v351, %v352
    %v354 = vand.u32 %v353, 4294901760
    %355 = vmatpush1.msra.mxu0 %v354
    %356 = vmatprep.subr.mxu0 0.0
    %v357 = vand.u32 %v30, 4294901760
    %v358 = vsub.f32 %v30, %v357
    %v359 = vand.u32 %v358, 4294901760
    %v360 = vsub.f32 %v358, %v359
    %v361 = vand.u32 %v360, 4294901760
    %362 = vmatpush1.msra.mxu0 %v361
    %363 = vmatprep.subr.mxu0 0.0
    %v364 = vand.u32 %v31, 4294901760
    %v365 = vsub.f32 %v31, %v364
    %v366 = vand.u32 %v365, 4294901760
    %v367 = vsub.f32 %v365, %v366
    %v368 = vand.u32 %v367, 4294901760
    %369 = vmatpush1.msra.mxu0 %v368
    %370 = vmatprep.subr.mxu0 0.0
    %v371 = vand.u32 %v32, 4294901760
    %v372 = vsub.f32 %v32, %v371
    %v373 = vand.u32 %v372, 4294901760
    %v374 = vsub.f32 %v372, %v373
    %v375 = vand.u32 %v374, 4294901760
    %376 = vmatpush1.msra.mxu0 %v375
    %377 = vmatprep.subr.mxu0 0.0
    %v378 = vand.u32 %v33, 4294901760
    %v379 = vsub.f32 %v33, %v378
    %v380 = vand.u32 %v379, 4294901760
    %v381 = vsub.f32 %v379, %v380
    %v382 = vand.u32 %v381, 4294901760
    %383 = vmatpush1.msra.mxu0 %v382
    %384 = vmatprep.subr.mxu0 0.0
    %v385 = vand.u32 %v34, 4294901760
    %v386 = vsub.f32 %v34, %v385
    %v387 = vand.u32 %v386, 4294901760
    %v388 = vsub.f32 %v386, %v387
    %v389 = vand.u32 %v388, 4294901760
    %390 = vmatpush1.msra.mxu0 %v389
    %391 = vmatprep.subr.mxu0 0.0
    %v392 = vand.u32 %v35, 4294901760
    %v393 = vsub.f32 %v35, %v392
    %v394 = vand.u32 %v393, 4294901760
    %v395 = vsub.f32 %v393, %v394
    %v396 = vand.u32 %v395, 4294901760
    %397 = vmatpush1.msra.mxu0 %v396
    %398 = vmatprep.subr.mxu0 0.0
    %v399 = vand.u32 %v36, 4294901760
    %v400 = vsub.f32 %v36, %v399
    %v401 = vand.u32 %v400, 4294901760
    %v402 = vsub.f32 %v400, %v401
    %v403 = vand.u32 %v402, 4294901760
    %404 = vmatpush1.msra.mxu0 %v403
    %405 = vmatprep.subr.mxu0 0.0
    %v406 = vand.u32 %v37, 4294901760
    %v407 = vsub.f32 %v37, %v406
    %v408 = vand.u32 %v407, 4294901760
    %v409 = vsub.f32 %v407, %v408
    %v410 = vand.u32 %v409, 4294901760
    %411 = vmatpush1.msra.mxu0 %v410
    %412 = vmatprep.subr.mxu0 0.0
    %v413 = vand.u32 %v38, 4294901760
    %v414 = vsub.f32 %v38, %v413
    %v415 = vand.u32 %v414, 4294901760
    %v416 = vsub.f32 %v414, %v415
    %v417 = vand.u32 %v416, 4294901760
    %418 = vmatpush1.msra.mxu0 %v417
    %419 = vmatprep.subr.mxu0 0.0
    %v420 = vand.u32 %v39, 4294901760
    %v421 = vsub.f32 %v39, %v420
    %v422 = vand.u32 %v421, 4294901760
    %v423 = vsub.f32 %v421, %v422
    %v424 = vand.u32 %v423, 4294901760
    %425 = vmatpush1.msra.mxu0 %v424
    %426 = vmatprep.subr.mxu0 0.0
    %v427 = vand.u32 %v40, 4294901760
    %v428 = vsub.f32 %v40, %v427
    %v429 = vand.u32 %v428, 4294901760
    %v430 = vsub.f32 %v428, %v429
    %v431 = vand.u32 %v430, 4294901760
    %432 = vmatpush1.msra.mxu0 %v431
    %433 = vmatprep.subr.mxu0 0.0
    %v434 = vand.u32 %v41, 4294901760
    %v435 = vsub.f32 %v41, %v434
    %v436 = vand.u32 %v435, 4294901760
    %v437 = vsub.f32 %v435, %v436
    %v438 = vand.u32 %v437, 4294901760
    %439 = vmatpush1.msra.mxu0 %v438
    %440 = vmatprep.subr.mxu0 0.0
    %v441 = vand.u32 %v42, 4294901760
    %v442 = vsub.f32 %v42, %v441
    %v443 = vand.u32 %v442, 4294901760
    %v444 = vsub.f32 %v442, %v443
    %v445 = vand.u32 %v444, 4294901760
    %446 = vmatpush1.msra.mxu0 %v445
    %447 = vmatprep.subr.mxu0 0.0
    %v448 = vand.u32 %v43, 4294901760
    %v449 = vsub.f32 %v43, %v448
    %v450 = vand.u32 %v449, 4294901760
    %v451 = vsub.f32 %v449, %v450
    %v452 = vand.u32 %v451, 4294901760
    %453 = vmatpush1.msra.mxu0 %v452
    %454 = vmatprep.subr.mxu0 0.0
    %v455 = vand.u32 %v44, 4294901760
    %v456 = vsub.f32 %v44, %v455
    %v457 = vand.u32 %v456, 4294901760
    %v458 = vsub.f32 %v456, %v457
    %v459 = vand.u32 %v458, 4294901760
    %460 = vmatpush1.msra.mxu0 %v459
    %461 = vmatprep.subr.mxu0 0.0
    %v462 = vand.u32 %v45, 4294901760
    %v463 = vsub.f32 %v45, %v462
    %v464 = vand.u32 %v463, 4294901760
    %v465 = vsub.f32 %v463, %v464
    %v466 = vand.u32 %v465, 4294901760
    %467 = vmatpush1.msra.mxu0 %v466
    %468 = vmatprep.subr.mxu0 0.0
    %v469 = vand.u32 %v46, 4294901760
    %v470 = vsub.f32 %v46, %v469
    %v471 = vand.u32 %v470, 4294901760
    %v472 = vsub.f32 %v470, %v471
    %v473 = vand.u32 %v472, 4294901760
    %474 = vmatpush1.msra.mxu0 %v473
    %475 = vmatprep.subr.mxu0 0.0
    %v476 = vand.u32 %v47, 4294901760
    %v477 = vsub.f32 %v47, %v476
    %v478 = vand.u32 %v477, 4294901760
    %v479 = vsub.f32 %v477, %v478
    %v480 = vand.u32 %v479, 4294901760
    %481 = vmatpush1.msra.mxu0 %v480
    %482 = vmatprep.subr.mxu0 0.0
    %v483 = vand.u32 %v48, 4294901760
    %v484 = vsub.f32 %v48, %v483
    %v485 = vand.u32 %v484, 4294901760
    %v486 = vsub.f32 %v484, %v485
    %v487 = vand.u32 %v486, 4294901760
    %488 = vmatpush1.msra.mxu0 %v487
    %v489 = vand.u32 %v137, 4294901760
    %490 = vmatprep.mubr.f32.mxu0 %v489
    %v491 = vand.u32 %v129, 4294901760
    %492 = vmatmul.mubr.f32.gmra.mrb[0].mxu0 %v491
    %v493 = vpop.f32.mrb[0].mxu0
    %v494 = vadd.f32 %v262, %v493
    %v495 = vpop.f32.mrb[0].mxu0
    %496 = vdwg.mxu0
    %497 = vmatprep.subr.mxu0 0.0
    %v498 = vand.u32 %v17, 4294901760
    %v499 = vsub.f32 %v17, %v498
    %500 = vmatpush1.msra.mxu0 %v499
    %501 = vmatprep.subr.mxu0 0.0
    %v502 = vand.u32 %v18, 4294901760
    %v503 = vsub.f32 %v18, %v502
    %504 = vmatpush1.msra.mxu0 %v503
    %505 = vmatprep.subr.mxu0 0.0
    %v506 = vand.u32 %v19, 4294901760
    %v507 = vsub.f32 %v19, %v506
    %508 = vmatpush1.msra.mxu0 %v507
    %509 = vmatprep.subr.mxu0 0.0
    %v510 = vand.u32 %v20, 4294901760
    %v511 = vsub.f32 %v20, %v510
    %512 = vmatpush1.msra.mxu0 %v511
    %513 = vmatprep.subr.mxu0 0.0
    %v514 = vand.u32 %v21, 4294901760
    %v515 = vsub.f32 %v21, %v514
    %516 = vmatpush1.msra.mxu0 %v515
    %517 = vmatprep.subr.mxu0 0.0
    %v518 = vand.u32 %v22, 4294901760
    %v519 = vsub.f32 %v22, %v518
    %520 = vmatpush1.msra.mxu0 %v519
    %521 = vmatprep.subr.mxu0 0.0
    %v522 = vand.u32 %v23, 4294901760
    %v523 = vsub.f32 %v23, %v522
    %524 = vmatpush1.msra.mxu0 %v523
    %525 = vmatprep.subr.mxu0 0.0
    %v526 = vand.u32 %v24, 4294901760
    %v527 = vsub.f32 %v24, %v526
    %528 = vmatpush1.msra.mxu0 %v527
    %529 = vmatprep.subr.mxu0 0.0
    %v530 = vand.u32 %v25, 4294901760
    %v531 = vsub.f32 %v25, %v530
    %532 = vmatpush1.msra.mxu0 %v531
    %533 = vmatprep.subr.mxu0 0.0
    %v534 = vand.u32 %v26, 4294901760
    %v535 = vsub.f32 %v26, %v534
    %536 = vmatpush1.msra.mxu0 %v535
    %537 = vmatprep.subr.mxu0 0.0
    %v538 = vand.u32 %v27, 4294901760
    %v539 = vsub.f32 %v27, %v538
    %540 = vmatpush1.msra.mxu0 %v539
    %541 = vmatprep.subr.mxu0 0.0
    %v542 = vand.u32 %v28, 4294901760
    %v543 = vsub.f32 %v28, %v542
    %544 = vmatpush1.msra.mxu0 %v543
    %545 = vmatprep.subr.mxu0 0.0
    %v546 = vand.u32 %v29, 4294901760
    %v547 = vsub.f32 %v29, %v546
    %548 = vmatpush1.msra.mxu0 %v547
    %549 = vmatprep.subr.mxu0 0.0
    %v550 = vand.u32 %v30, 4294901760
    %v551 = vsub.f32 %v30, %v550
    %552 = vmatpush1.msra.mxu0 %v551
    %553 = vmatprep.subr.mxu0 0.0
    %v554 = vand.u32 %v31, 4294901760
    %v555 = vsub.f32 %v31, %v554
    %556 = vmatpush1.msra.mxu0 %v555
    %557 = vmatprep.subr.mxu0 0.0
    %v558 = vand.u32 %v32, 4294901760
    %v559 = vsub.f32 %v32, %v558
    %560 = vmatpush1.msra.mxu0 %v559
    %561 = vmatprep.subr.mxu0 0.0
    %v562 = vand.u32 %v33, 4294901760
    %v563 = vsub.f32 %v33, %v562
    %564 = vmatpush1.msra.mxu0 %v563
    %565 = vmatprep.subr.mxu0 0.0
    %v566 = vand.u32 %v34, 4294901760
    %v567 = vsub.f32 %v34, %v566
    %568 = vmatpush1.msra.mxu0 %v567
    %569 = vmatprep.subr.mxu0 0.0
    %v570 = vand.u32 %v35, 4294901760
    %v571 = vsub.f32 %v35, %v570
    %572 = vmatpush1.msra.mxu0 %v571
    %573 = vmatprep.subr.mxu0 0.0
    %v574 = vand.u32 %v36, 4294901760
    %v575 = vsub.f32 %v36, %v574
    %576 = vmatpush1.msra.mxu0 %v575
    %577 = vmatprep.subr.mxu0 0.0
    %v578 = vand.u32 %v37, 4294901760
    %v579 = vsub.f32 %v37, %v578
    %580 = vmatpush1.msra.mxu0 %v579
    %581 = vmatprep.subr.mxu0 0.0
    %v582 = vand.u32 %v38, 4294901760
    %v583 = vsub.f32 %v38, %v582
    %584 = vmatpush1.msra.mxu0 %v583
    %585 = vmatprep.subr.mxu0 0.0
    %v586 = vand.u32 %v39, 4294901760
    %v587 = vsub.f32 %v39, %v586
    %588 = vmatpush1.msra.mxu0 %v587
    %589 = vmatprep.subr.mxu0 0.0
    %v590 = vand.u32 %v40, 4294901760
    %v591 = vsub.f32 %v40, %v590
    %592 = vmatpush1.msra.mxu0 %v591
    %593 = vmatprep.subr.mxu0 0.0
    %v594 = vand.u32 %v41, 4294901760
    %v595 = vsub.f32 %v41, %v594
    %596 = vmatpush1.msra.mxu0 %v595
    %597 = vmatprep.subr.mxu0 0.0
    %v598 = vand.u32 %v42, 4294901760
    %v599 = vsub.f32 %v42, %v598
    %600 = vmatpush1.msra.mxu0 %v599
    %601 = vmatprep.subr.mxu0 0.0
    %v602 = vand.u32 %v43, 4294901760
    %v603 = vsub.f32 %v43, %v602
    %604 = vmatpush1.msra.mxu0 %v603
    %605 = vmatprep.subr.mxu0 0.0
    %v606 = vand.u32 %v44, 4294901760
    %v607 = vsub.f32 %v44, %v606
    %608 = vmatpush1.msra.mxu0 %v607
    %609 = vmatprep.subr.mxu0 0.0
    %v610 = vand.u32 %v45, 4294901760
    %v611 = vsub.f32 %v45, %v610
    %612 = vmatpush1.msra.mxu0 %v611
    %613 = vmatprep.subr.mxu0 0.0
    %v614 = vand.u32 %v46, 4294901760
    %v615 = vsub.f32 %v46, %v614
    %616 = vmatpush1.msra.mxu0 %v615
    %617 = vmatprep.subr.mxu0 0.0
    %v618 = vand.u32 %v47, 4294901760
    %v619 = vsub.f32 %v47, %v618
    %620 = vmatpush1.msra.mxu0 %v619
    %621 = vmatprep.subr.mxu0 0.0
    %v622 = vand.u32 %v48, 4294901760
    %v623 = vsub.f32 %v48, %v622
    %624 = vmatpush1.msra.mxu0 %v623
    %v625 = vand.u32 %v137, 4294901760
    %v626 = vsub.f32 %v137, %v625
    %627 = vmatprep.mubr.f32.mxu0 %v626
    %v628 = vand.u32 %v129, 4294901760
    %v629 = vsub.f32 %v129, %v628
    %630 = vmatmul.mubr.f32.gmra.mrb[0].mxu0 %v629
    %v631 = vpop.f32.mrb[0].mxu0
    %v632 = vadd.f32 %v494, %v631
    %v633 = vpop.f32.mrb[0].mxu0
    %634 = vdwg.mxu0
    %635 = vmatprep.subr.mxu0 0.0
    %v636 = vand.u32 %v17, 4294901760
    %637 = vmatpush1.msra.mxu0 %v636
    %638 = vmatprep.subr.mxu0 0.0
    %v639 = vand.u32 %v18, 4294901760
    %640 = vmatpush1.msra.mxu0 %v639
    %641 = vmatprep.subr.mxu0 0.0
    %v642 = vand.u32 %v19, 4294901760
    %643 = vmatpush1.msra.mxu0 %v642
    %644 = vmatprep.subr.mxu0 0.0
    %v645 = vand.u32 %v20, 4294901760
    %646 = vmatpush1.msra.mxu0 %v645
    %647 = vmatprep.subr.mxu0 0.0
    %v648 = vand.u32 %v21, 4294901760
    %649 = vmatpush1.msra.mxu0 %v648
    %650 = vmatprep.subr.mxu0 0.0
    %v651 = vand.u32 %v22, 4294901760
    %652 = vmatpush1.msra.mxu0 %v651
    %653 = vmatprep.subr.mxu0 0.0
    %v654 = vand.u32 %v23, 4294901760
    %655 = vmatpush1.msra.mxu0 %v654
    %656 = vmatprep.subr.mxu0 0.0
    %v657 = vand.u32 %v24, 4294901760
    %658 = vmatpush1.msra.mxu0 %v657
    %659 = vmatprep.subr.mxu0 0.0
    %v660 = vand.u32 %v25, 4294901760
    %661 = vmatpush1.msra.mxu0 %v660
    %662 = vmatprep.subr.mxu0 0.0
    %v663 = vand.u32 %v26, 4294901760
    %664 = vmatpush1.msra.mxu0 %v663
    %665 = vmatprep.subr.mxu0 0.0
    %v666 = vand.u32 %v27, 4294901760
    %667 = vmatpush1.msra.mxu0 %v666
    %668 = vmatprep.subr.mxu0 0.0
    %v669 = vand.u32 %v28, 4294901760
    %670 = vmatpush1.msra.mxu0 %v669
    %671 = vmatprep.subr.mxu0 0.0
    %v672 = vand.u32 %v29, 4294901760
    %673 = vmatpush1.msra.mxu0 %v672
    %674 = vmatprep.subr.mxu0 0.0
    %v675 = vand.u32 %v30, 4294901760
    %676 = vmatpush1.msra.mxu0 %v675
    %677 = vmatprep.subr.mxu0 0.0
    %v678 = vand.u32 %v31, 4294901760
    %679 = vmatpush1.msra.mxu0 %v678
    %680 = vmatprep.subr.mxu0 0.0
    %v681 = vand.u32 %v32, 4294901760
    %682 = vmatpush1.msra.mxu0 %v681
    %683 = vmatprep.subr.mxu0 0.0
    %v684 = vand.u32 %v33, 4294901760
    %685 = vmatpush1.msra.mxu0 %v684
    %686 = vmatprep.subr.mxu0 0.0
    %v687 = vand.u32 %v34, 4294901760
    %688 = vmatpush1.msra.mxu0 %v687
    %689 = vmatprep.subr.mxu0 0.0
    %v690 = vand.u32 %v35, 4294901760
    %691 = vmatpush1.msra.mxu0 %v690
    %692 = vmatprep.subr.mxu0 0.0
    %v693 = vand.u32 %v36, 4294901760
    %694 = vmatpush1.msra.mxu0 %v693
    %695 = vmatprep.subr.mxu0 0.0
    %v696 = vand.u32 %v37, 4294901760
    %697 = vmatpush1.msra.mxu0 %v696
    %698 = vmatprep.subr.mxu0 0.0
    %v699 = vand.u32 %v38, 4294901760
    %700 = vmatpush1.msra.mxu0 %v699
    %701 = vmatprep.subr.mxu0 0.0
    %v702 = vand.u32 %v39, 4294901760
    %703 = vmatpush1.msra.mxu0 %v702
    %704 = vmatprep.subr.mxu0 0.0
    %v705 = vand.u32 %v40, 4294901760
    %706 = vmatpush1.msra.mxu0 %v705
    %707 = vmatprep.subr.mxu0 0.0
    %v708 = vand.u32 %v41, 4294901760
    %709 = vmatpush1.msra.mxu0 %v708
    %710 = vmatprep.subr.mxu0 0.0
    %v711 = vand.u32 %v42, 4294901760
    %712 = vmatpush1.msra.mxu0 %v711
    %713 = vmatprep.subr.mxu0 0.0
    %v714 = vand.u32 %v43, 4294901760
    %715 = vmatpush1.msra.mxu0 %v714
    %716 = vmatprep.subr.mxu0 0.0
    %v717 = vand.u32 %v44, 4294901760
    %718 = vmatpush1.msra.mxu0 %v717
    %719 = vmatprep.subr.mxu0 0.0
    %v720 = vand.u32 %v45, 4294901760
    %721 = vmatpush1.msra.mxu0 %v720
    %722 = vmatprep.subr.mxu0 0.0
    %v723 = vand.u32 %v46, 4294901760
    %724 = vmatpush1.msra.mxu0 %v723
    %725 = vmatprep.subr.mxu0 0.0
    %v726 = vand.u32 %v47, 4294901760
    %727 = vmatpush1.msra.mxu0 %v726
    %728 = vmatprep.subr.mxu0 0.0
    %v729 = vand.u32 %v48, 4294901760
    %730 = vmatpush1.msra.mxu0 %v729
    %v731 = vand.u32 %v137, 4294901760
    %v732 = vsub.f32 %v137, %v731
    %v733 = vand.u32 %v732, 4294901760
    %734 = vmatprep.mubr.f32.mxu0 %v733
    %v735 = vand.u32 %v129, 4294901760
    %v736 = vsub.f32 %v129, %v735
    %v737 = vand.u32 %v736, 4294901760
    %738 = vmatmul.mubr.f32.gmra.mrb[0].mxu0 %v737
    %v739 = vpop.f32.mrb[0].mxu0
    %v740 = vadd.f32 %v632, %v739
    %v741 = vpop.f32.mrb[0].mxu0
    %742 = vdwg.mxu0
    %743 = vmatprep.subr.mxu0 0.0
    %v744 = vand.u32 %v17, 4294901760
    %v745 = vsub.f32 %v17, %v744
    %v746 = vand.u32 %v745, 4294901760
    %747 = vmatpush1.msra.mxu0 %v746
    %748 = vmatprep.subr.mxu0 0.0
    %v749 = vand.u32 %v18, 4294901760
    %v750 = vsub.f32 %v18, %v749
    %v751 = vand.u32 %v750, 4294901760
    %752 = vmatpush1.msra.mxu0 %v751
    %753 = vmatprep.subr.mxu0 0.0
    %v754 = vand.u32 %v19, 4294901760
    %v755 = vsub.f32 %v19, %v754
    %v756 = vand.u32 %v755, 4294901760
    %757 = vmatpush1.msra.mxu0 %v756
    %758 = vmatprep.subr.mxu0 0.0
    %v759 = vand.u32 %v20, 4294901760
    %v760 = vsub.f32 %v20, %v759
    %v761 = vand.u32 %v760, 4294901760
    %762 = vmatpush1.msra.mxu0 %v761
    %763 = vmatprep.subr.mxu0 0.0
    %v764 = vand.u32 %v21, 4294901760
    %v765 = vsub.f32 %v21, %v764
    %v766 = vand.u32 %v765, 4294901760
    %767 = vmatpush1.msra.mxu0 %v766
    %768 = vmatprep.subr.mxu0 0.0
    %v769 = vand.u32 %v22, 4294901760
    %v770 = vsub.f32 %v22, %v769
    %v771 = vand.u32 %v770, 4294901760
    %772 = vmatpush1.msra.mxu0 %v771
    %773 = vmatprep.subr.mxu0 0.0
    %v774 = vand.u32 %v23, 4294901760
    %v775 = vsub.f32 %v23, %v774
    %v776 = vand.u32 %v775, 4294901760
    %777 = vmatpush1.msra.mxu0 %v776
    %778 = vmatprep.subr.mxu0 0.0
    %v779 = vand.u32 %v24, 4294901760
    %v780 = vsub.f32 %v24, %v779
    %v781 = vand.u32 %v780, 4294901760
    %782 = vmatpush1.msra.mxu0 %v781
    %783 = vmatprep.subr.mxu0 0.0
    %v784 = vand.u32 %v25, 4294901760
    %v785 = vsub.f32 %v25, %v784
    %v786 = vand.u32 %v785, 4294901760
    %787 = vmatpush1.msra.mxu0 %v786
    %788 = vmatprep.subr.mxu0 0.0
    %v789 = vand.u32 %v26, 4294901760
    %v790 = vsub.f32 %v26, %v789
    %v791 = vand.u32 %v790, 4294901760
    %792 = vmatpush1.msra.mxu0 %v791
    %793 = vmatprep.subr.mxu0 0.0
    %v794 = vand.u32 %v27, 4294901760
    %v795 = vsub.f32 %v27, %v794
    %v796 = vand.u32 %v795, 4294901760
    %797 = vmatpush1.msra.mxu0 %v796
    %798 = vmatprep.subr.mxu0 0.0
    %v799 = vand.u32 %v28, 4294901760
    %v800 = vsub.f32 %v28, %v799
    %v801 = vand.u32 %v800, 4294901760
    %802 = vmatpush1.msra.mxu0 %v801
    %803 = vmatprep.subr.mxu0 0.0
    %v804 = vand.u32 %v29, 4294901760
    %v805 = vsub.f32 %v29, %v804
    %v806 = vand.u32 %v805, 4294901760
    %807 = vmatpush1.msra.mxu0 %v806
    %808 = vmatprep.subr.mxu0 0.0
    %v809 = vand.u32 %v30, 4294901760
    %v810 = vsub.f32 %v30, %v809
    %v811 = vand.u32 %v810, 4294901760
    %812 = vmatpush1.msra.mxu0 %v811
    %813 = vmatprep.subr.mxu0 0.0
    %v814 = vand.u32 %v31, 4294901760
    %v815 = vsub.f32 %v31, %v814
    %v816 = vand.u32 %v815, 4294901760
    %817 = vmatpush1.msra.mxu0 %v816
    %818 = vmatprep.subr.mxu0 0.0
    %v819 = vand.u32 %v32, 4294901760
    %v820 = vsub.f32 %v32, %v819
    %v821 = vand.u32 %v820, 4294901760
    %822 = vmatpush1.msra.mxu0 %v821
    %823 = vmatprep.subr.mxu0 0.0
    %v824 = vand.u32 %v33, 4294901760
    %v825 = vsub.f32 %v33, %v824
    %v826 = vand.u32 %v825, 4294901760
    %827 = vmatpush1.msra.mxu0 %v826
    %828 = vmatprep.subr.mxu0 0.0
    %v829 = vand.u32 %v34, 4294901760
    %v830 = vsub.f32 %v34, %v829
    %v831 = vand.u32 %v830, 4294901760
    %832 = vmatpush1.msra.mxu0 %v831
    %833 = vmatprep.subr.mxu0 0.0
    %v834 = vand.u32 %v35, 4294901760
    %v835 = vsub.f32 %v35, %v834
    %v836 = vand.u32 %v835, 4294901760
    %837 = vmatpush1.msra.mxu0 %v836
    %838 = vmatprep.subr.mxu0 0.0
    %v839 = vand.u32 %v36, 4294901760
    %v840 = vsub.f32 %v36, %v839
    %v841 = vand.u32 %v840, 4294901760
    %842 = vmatpush1.msra.mxu0 %v841
    %843 = vmatprep.subr.mxu0 0.0
    %v844 = vand.u32 %v37, 4294901760
    %v845 = vsub.f32 %v37, %v844
    %v846 = vand.u32 %v845, 4294901760
    %847 = vmatpush1.msra.mxu0 %v846
    %848 = vmatprep.subr.mxu0 0.0
    %v849 = vand.u32 %v38, 4294901760
    %v850 = vsub.f32 %v38, %v849
    %v851 = vand.u32 %v850, 4294901760
    %852 = vmatpush1.msra.mxu0 %v851
    %853 = vmatprep.subr.mxu0 0.0
    %v854 = vand.u32 %v39, 4294901760
    %v855 = vsub.f32 %v39, %v854
    %v856 = vand.u32 %v855, 4294901760
    %857 = vmatpush1.msra.mxu0 %v856
    %858 = vmatprep.subr.mxu0 0.0
    %v859 = vand.u32 %v40, 4294901760
    %v860 = vsub.f32 %v40, %v859
    %v861 = vand.u32 %v860, 4294901760
    %862 = vmatpush1.msra.mxu0 %v861
    %863 = vmatprep.subr.mxu0 0.0
    %v864 = vand.u32 %v41, 4294901760
    %v865 = vsub.f32 %v41, %v864
    %v866 = vand.u32 %v865, 4294901760
    %867 = vmatpush1.msra.mxu0 %v866
    %868 = vmatprep.subr.mxu0 0.0
    %v869 = vand.u32 %v42, 4294901760
    %v870 = vsub.f32 %v42, %v869
    %v871 = vand.u32 %v870, 4294901760
    %872 = vmatpush1.msra.mxu0 %v871
    %873 = vmatprep.subr.mxu0 0.0
    %v874 = vand.u32 %v43, 4294901760
    %v875 = vsub.f32 %v43, %v874
    %v876 = vand.u32 %v875, 4294901760
    %877 = vmatpush1.msra.mxu0 %v876
    %878 = vmatprep.subr.mxu0 0.0
    %v879 = vand.u32 %v44, 4294901760
    %v880 = vsub.f32 %v44, %v879
    %v881 = vand.u32 %v880, 4294901760
    %882 = vmatpush1.msra.mxu0 %v881
    %883 = vmatprep.subr.mxu0 0.0
    %v884 = vand.u32 %v45, 4294901760
    %v885 = vsub.f32 %v45, %v884
    %v886 = vand.u32 %v885, 4294901760
    %887 = vmatpush1.msra.mxu0 %v886
    %888 = vmatprep.subr.mxu0 0.0
    %v889 = vand.u32 %v46, 4294901760
    %v890 = vsub.f32 %v46, %v889
    %v891 = vand.u32 %v890, 4294901760
    %892 = vmatpush1.msra.mxu0 %v891
    %893 = vmatprep.subr.mxu0 0.0
    %v894 = vand.u32 %v47, 4294901760
    %v895 = vsub.f32 %v47, %v894
    %v896 = vand.u32 %v895, 4294901760
    %897 = vmatpush1.msra.mxu0 %v896
    %898 = vmatprep.subr.mxu0 0.0
    %v899 = vand.u32 %v48, 4294901760
    %v900 = vsub.f32 %v48, %v899
    %v901 = vand.u32 %v900, 4294901760
    %902 = vmatpush1.msra.mxu0 %v901
    %v903 = vand.u32 %v137, 4294901760
    %904 = vmatprep.mubr.f32.mxu0 %v903
    %v905 = vand.u32 %v129, 4294901760
    %906 = vmatmul.mubr.f32.gmra.mrb[0].mxu0 %v905
    %v907 = vpop.f32.mrb[0].mxu0
    %v908 = vadd.f32 %v740, %v907
    %v909 = vpop.f32.mrb[0].mxu0
    %910 = vdwg.mxu0
    %911 = vmatprep.subr.mxu0 0.0
    %v912 = vand.u32 %v17, 4294901760
    %913 = vmatpush1.msra.mxu0 %v912
    %914 = vmatprep.subr.mxu0 0.0
    %v915 = vand.u32 %v18, 4294901760
    %916 = vmatpush1.msra.mxu0 %v915
    %917 = vmatprep.subr.mxu0 0.0
    %v918 = vand.u32 %v19, 4294901760
    %919 = vmatpush1.msra.mxu0 %v918
    %920 = vmatprep.subr.mxu0 0.0
    %v921 = vand.u32 %v20, 4294901760
    %922 = vmatpush1.msra.mxu0 %v921
    %923 = vmatprep.subr.mxu0 0.0
    %v924 = vand.u32 %v21, 4294901760
    %925 = vmatpush1.msra.mxu0 %v924
    %926 = vmatprep.subr.mxu0 0.0
    %v927 = vand.u32 %v22, 4294901760
    %928 = vmatpush1.msra.mxu0 %v927
    %929 = vmatprep.subr.mxu0 0.0
    %v930 = vand.u32 %v23, 4294901760
    %931 = vmatpush1.msra.mxu0 %v930
    %932 = vmatprep.subr.mxu0 0.0
    %v933 = vand.u32 %v24, 4294901760
    %934 = vmatpush1.msra.mxu0 %v933
    %935 = vmatprep.subr.mxu0 0.0
    %v936 = vand.u32 %v25, 4294901760
    %937 = vmatpush1.msra.mxu0 %v936
    %938 = vmatprep.subr.mxu0 0.0
    %v939 = vand.u32 %v26, 4294901760
    %940 = vmatpush1.msra.mxu0 %v939
    %941 = vmatprep.subr.mxu0 0.0
    %v942 = vand.u32 %v27, 4294901760
    %943 = vmatpush1.msra.mxu0 %v942
    %944 = vmatprep.subr.mxu0 0.0
    %v945 = vand.u32 %v28, 4294901760
    %946 = vmatpush1.msra.mxu0 %v945
    %947 = vmatprep.subr.mxu0 0.0
    %v948 = vand.u32 %v29, 4294901760
    %949 = vmatpush1.msra.mxu0 %v948
    %950 = vmatprep.subr.mxu0 0.0
    %v951 = vand.u32 %v30, 4294901760
    %952 = vmatpush1.msra.mxu0 %v951
    %953 = vmatprep.subr.mxu0 0.0
    %v954 = vand.u32 %v31, 4294901760
    %955 = vmatpush1.msra.mxu0 %v954
    %956 = vmatprep.subr.mxu0 0.0
    %v957 = vand.u32 %v32, 4294901760
    %958 = vmatpush1.msra.mxu0 %v957
    %959 = vmatprep.subr.mxu0 0.0
    %v960 = vand.u32 %v33, 4294901760
    %961 = vmatpush1.msra.mxu0 %v960
    %962 = vmatprep.subr.mxu0 0.0
    %v963 = vand.u32 %v34, 4294901760
    %964 = vmatpush1.msra.mxu0 %v963
    %965 = vmatprep.subr.mxu0 0.0
    %v966 = vand.u32 %v35, 4294901760
    %967 = vmatpush1.msra.mxu0 %v966
    %968 = vmatprep.subr.mxu0 0.0
    %v969 = vand.u32 %v36, 4294901760
    %970 = vmatpush1.msra.mxu0 %v969
    %971 = vmatprep.subr.mxu0 0.0
    %v972 = vand.u32 %v37, 4294901760
    %973 = vmatpush1.msra.mxu0 %v972
    %974 = vmatprep.subr.mxu0 0.0
    %v975 = vand.u32 %v38, 4294901760
    %976 = vmatpush1.msra.mxu0 %v975
    %977 = vmatprep.subr.mxu0 0.0
    %v978 = vand.u32 %v39, 4294901760
    %979 = vmatpush1.msra.mxu0 %v978
    %980 = vmatprep.subr.mxu0 0.0
    %v981 = vand.u32 %v40, 4294901760
    %982 = vmatpush1.msra.mxu0 %v981
    %983 = vmatprep.subr.mxu0 0.0
    %v984 = vand.u32 %v41, 4294901760
    %985 = vmatpush1.msra.mxu0 %v984
    %986 = vmatprep.subr.mxu0 0.0
    %v987 = vand.u32 %v42, 4294901760
    %988 = vmatpush1.msra.mxu0 %v987
    %989 = vmatprep.subr.mxu0 0.0
    %v990 = vand.u32 %v43, 4294901760
    %991 = vmatpush1.msra.mxu0 %v990
    %992 = vmatprep.subr.mxu0 0.0
    %v993 = vand.u32 %v44, 4294901760
    %994 = vmatpush1.msra.mxu0 %v993
    %995 = vmatprep.subr.mxu0 0.0
    %v996 = vand.u32 %v45, 4294901760
    %997 = vmatpush1.msra.mxu0 %v996
    %998 = vmatprep.subr.mxu0 0.0
    %v999 = vand.u32 %v46, 4294901760
    %1000 = vmatpush1.msra.mxu0 %v999
    %1001 = vmatprep.subr.mxu0 0.0
    %v1002 = vand.u32 %v47, 4294901760
    %1003 = vmatpush1.msra.mxu0 %v1002
    %1004 = vmatprep.subr.mxu0 0.0
    %v1005 = vand.u32 %v48, 4294901760
    %1006 = vmatpush1.msra.mxu0 %v1005
    %v1007 = vand.u32 %v137, 4294901760
    %1008 = vmatprep.mubr.f32.mxu0 %v1007
    %v1009 = vand.u32 %v129, 4294901760
    %1010 = vmatmul.mubr.f32.gmra.mrb[0].mxu0 %v1009
    %v1011 = vpop.f32.mrb[0].mxu0
    %v1012 = vadd.f32 %v908, %v1011
    %v1013 = vpop.f32.mrb[0].mxu0
    %1014 = vdwg.mxu0
    %1015 = vmatprep.subr.mxu0 0.0
    %v1016 = vand.u32 %v49, 4294901760
    %1017 = vmatpush1.msra.mxu0 %v1016
    %1018 = vmatprep.subr.mxu0 0.0
    %v1019 = vand.u32 %v50, 4294901760
    %1020 = vmatpush1.msra.mxu0 %v1019
    %1021 = vmatprep.subr.mxu0 0.0
    %v1022 = vand.u32 %v51, 4294901760
    %1023 = vmatpush1.msra.mxu0 %v1022
    %1024 = vmatprep.subr.mxu0 0.0
    %v1025 = vand.u32 %v52, 4294901760
    %1026 = vmatpush1.msra.mxu0 %v1025
    %1027 = vmatprep.subr.mxu0 0.0
    %v1028 = vand.u32 %v53, 4294901760
    %1029 = vmatpush1.msra.mxu0 %v1028
    %1030 = vmatprep.subr.mxu0 0.0
    %v1031 = vand.u32 %v54, 4294901760
    %1032 = vmatpush1.msra.mxu0 %v1031
    %1033 = vmatprep.subr.mxu0 0.0
    %v1034 = vand.u32 %v55, 4294901760
    %1035 = vmatpush1.msra.mxu0 %v1034
    %1036 = vmatprep.subr.mxu0 0.0
    %v1037 = vand.u32 %v56, 4294901760
    %1038 = vmatpush1.msra.mxu0 %v1037
    %1039 = vmatprep.subr.mxu0 0.0
    %v1040 = vand.u32 %v57, 4294901760
    %1041 = vmatpush1.msra.mxu0 %v1040
    %1042 = vmatprep.subr.mxu0 0.0
    %v1043 = vand.u32 %v58, 4294901760
    %1044 = vmatpush1.msra.mxu0 %v1043
    %1045 = vmatprep.subr.mxu0 0.0
    %v1046 = vand.u32 %v59, 4294901760
    %1047 = vmatpush1.msra.mxu0 %v1046
    %1048 = vmatprep.subr.mxu0 0.0
    %v1049 = vand.u32 %v60, 4294901760
    %1050 = vmatpush1.msra.mxu0 %v1049
    %1051 = vmatprep.subr.mxu0 0.0
    %v1052 = vand.u32 %v61, 4294901760
    %1053 = vmatpush1.msra.mxu0 %v1052
    %1054 = vmatprep.subr.mxu0 0.0
    %v1055 = vand.u32 %v62, 4294901760
    %1056 = vmatpush1.msra.mxu0 %v1055
    %1057 = vmatprep.subr.mxu0 0.0
    %v1058 = vand.u32 %v63, 4294901760
    %1059 = vmatpush1.msra.mxu0 %v1058
    %1060 = vmatprep.subr.mxu0 0.0
    %v1061 = vand.u32 %v64, 4294901760
    %1062 = vmatpush1.msra.mxu0 %v1061
    %1063 = vmatprep.subr.mxu0 0.0
    %v1064 = vand.u32 %v65, 4294901760
    %1065 = vmatpush1.msra.mxu0 %v1064
    %1066 = vmatprep.subr.mxu0 0.0
    %v1067 = vand.u32 %v66, 4294901760
    %1068 = vmatpush1.msra.mxu0 %v1067
    %1069 = vmatprep.subr.mxu0 0.0
    %v1070 = vand.u32 %v67, 4294901760
    %1071 = vmatpush1.msra.mxu0 %v1070
    %1072 = vmatprep.subr.mxu0 0.0
    %v1073 = vand.u32 %v68, 4294901760
    %1074 = vmatpush1.msra.mxu0 %v1073
    %1075 = vmatprep.subr.mxu0 0.0
    %v1076 = vand.u32 %v69, 4294901760
    %1077 = vmatpush1.msra.mxu0 %v1076
    %1078 = vmatprep.subr.mxu0 0.0
    %v1079 = vand.u32 %v70, 4294901760
    %1080 = vmatpush1.msra.mxu0 %v1079
    %1081 = vmatprep.subr.mxu0 0.0
    %v1082 = vand.u32 %v71, 4294901760
    %1083 = vmatpush1.msra.mxu0 %v1082
    %1084 = vmatprep.subr.mxu0 0.0
    %v1085 = vand.u32 %v72, 4294901760
    %1086 = vmatpush1.msra.mxu0 %v1085
    %1087 = vmatprep.subr.mxu0 0.0
    %v1088 = vand.u32 %v73, 4294901760
    %1089 = vmatpush1.msra.mxu0 %v1088
    %1090 = vmatprep.subr.mxu0 0.0
    %v1091 = vand.u32 %v74, 4294901760
    %1092 = vmatpush1.msra.mxu0 %v1091
    %1093 = vmatprep.subr.mxu0 0.0
    %v1094 = vand.u32 %v75, 4294901760
    %1095 = vmatpush1.msra.mxu0 %v1094
    %1096 = vmatprep.subr.mxu0 0.0
    %v1097 = vand.u32 %v76, 4294901760
    %1098 = vmatpush1.msra.mxu0 %v1097
    %1099 = vmatprep.subr.mxu0 0.0
    %v1100 = vand.u32 %v77, 4294901760
    %1101 = vmatpush1.msra.mxu0 %v1100
    %1102 = vmatprep.subr.mxu0 0.0
    %v1103 = vand.u32 %v78, 4294901760
    %1104 = vmatpush1.msra.mxu0 %v1103
    %1105 = vmatprep.subr.mxu0 0.0
    %v1106 = vand.u32 %v79, 4294901760
    %1107 = vmatpush1.msra.mxu0 %v1106
    %1108 = vmatprep.subr.mxu0 0.0
    %v1109 = vand.u32 %v80, 4294901760
    %1110 = vmatpush1.msra.mxu0 %v1109
    %v1111 = vand.u32 %v138, 4294901760
    %v1112 = vsub.f32 %v138, %v1111
    %v1113 = vand.u32 %v1112, 4294901760
    %v1114 = vsub.f32 %v1112, %v1113
    %v1115 = vand.u32 %v1114, 4294901760
    %1116 = vmatprep.mubr.f32.mxu0 %v1115
    %v1117 = vand.u32 %v136, 4294901760
    %v1118 = vsub.f32 %v136, %v1117
    %v1119 = vand.u32 %v1118, 4294901760
    %v1120 = vsub.f32 %v1118, %v1119
    %v1121 = vand.u32 %v1120, 4294901760
    %1122 = vmatmul.mubr.f32.gmra.mrb[0].mxu0 %v1121
    %v1123 = vpop.f32.mrb[0].mxu0
    %v1124 = vadd.f32 %v1012, %v1123
    %v1125 = vpop.f32.mrb[0].mxu0
    %1126 = vdwg.mxu0
    %1127 = vmatprep.subr.mxu0 0.0
    %v1128 = vand.u32 %v49, 4294901760
    %v1129 = vsub.f32 %v49, %v1128
    %v1130 = vand.u32 %v1129, 4294901760
    %v1131 = vsub.f32 %v1129, %v1130
    %v1132 = vand.u32 %v1131, 4294901760
    %1133 = vmatpush1.msra.mxu0 %v1132
    %1134 = vmatprep.subr.mxu0 0.0
    %v1135 = vand.u32 %v50, 4294901760
    %v1136 = vsub.f32 %v50, %v1135
    %v1137 = vand.u32 %v1136, 4294901760
    %v1138 = vsub.f32 %v1136, %v1137
    %v1139 = vand.u32 %v1138, 4294901760
    %1140 = vmatpush1.msra.mxu0 %v1139
    %1141 = vmatprep.subr.mxu0 0.0
    %v1142 = vand.u32 %v51, 4294901760
    %v1143 = vsub.f32 %v51, %v1142
    %v1144 = vand.u32 %v1143, 4294901760
    %v1145 = vsub.f32 %v1143, %v1144
    %v1146 = vand.u32 %v1145, 4294901760
    %1147 = vmatpush1.msra.mxu0 %v1146
    %1148 = vmatprep.subr.mxu0 0.0
    %v1149 = vand.u32 %v52, 4294901760
    %v1150 = vsub.f32 %v52, %v1149
    %v1151 = vand.u32 %v1150, 4294901760
    %v1152 = vsub.f32 %v1150, %v1151
    %v1153 = vand.u32 %v1152, 4294901760
    %1154 = vmatpush1.msra.mxu0 %v1153
    %1155 = vmatprep.subr.mxu0 0.0
    %v1156 = vand.u32 %v53, 4294901760
    %v1157 = vsub.f32 %v53, %v1156
    %v1158 = vand.u32 %v1157, 4294901760
    %v1159 = vsub.f32 %v1157, %v1158
    %v1160 = vand.u32 %v1159, 4294901760
    %1161 = vmatpush1.msra.mxu0 %v1160
    %1162 = vmatprep.subr.mxu0 0.0
    %v1163 = vand.u32 %v54, 4294901760
    %v1164 = vsub.f32 %v54, %v1163
    %v1165 = vand.u32 %v1164, 4294901760
    %v1166 = vsub.f32 %v1164, %v1165
    %v1167 = vand.u32 %v1166, 4294901760
    %1168 = vmatpush1.msra.mxu0 %v1167
    %1169 = vmatprep.subr.mxu0 0.0
    %v1170 = vand.u32 %v55, 4294901760
    %v1171 = vsub.f32 %v55, %v1170
    %v1172 = vand.u32 %v1171, 4294901760
    %v1173 = vsub.f32 %v1171, %v1172
    %v1174 = vand.u32 %v1173, 4294901760
    %1175 = vmatpush1.msra.mxu0 %v1174
    %1176 = vmatprep.subr.mxu0 0.0
    %v1177 = vand.u32 %v56, 4294901760
    %v1178 = vsub.f32 %v56, %v1177
    %v1179 = vand.u32 %v1178, 4294901760
    %v1180 = vsub.f32 %v1178, %v1179
    %v1181 = vand.u32 %v1180, 4294901760
    %1182 = vmatpush1.msra.mxu0 %v1181
    %1183 = vmatprep.subr.mxu0 0.0
    %v1184 = vand.u32 %v57, 4294901760
    %v1185 = vsub.f32 %v57, %v1184
    %v1186 = vand.u32 %v1185, 4294901760
    %v1187 = vsub.f32 %v1185, %v1186
    %v1188 = vand.u32 %v1187, 4294901760
    %1189 = vmatpush1.msra.mxu0 %v1188
    %1190 = vmatprep.subr.mxu0 0.0
    %v1191 = vand.u32 %v58, 4294901760
    %v1192 = vsub.f32 %v58, %v1191
    %v1193 = vand.u32 %v1192, 4294901760
    %v1194 = vsub.f32 %v1192, %v1193
    %v1195 = vand.u32 %v1194, 4294901760
    %1196 = vmatpush1.msra.mxu0 %v1195
    %1197 = vmatprep.subr.mxu0 0.0
    %v1198 = vand.u32 %v59, 4294901760
    %v1199 = vsub.f32 %v59, %v1198
    %v1200 = vand.u32 %v1199, 4294901760
    %v1201 = vsub.f32 %v1199, %v1200
    %v1202 = vand.u32 %v1201, 4294901760
    %1203 = vmatpush1.msra.mxu0 %v1202
    %1204 = vmatprep.subr.mxu0 0.0
    %v1205 = vand.u32 %v60, 4294901760
    %v1206 = vsub.f32 %v60, %v1205
    %v1207 = vand.u32 %v1206, 4294901760
    %v1208 = vsub.f32 %v1206, %v1207
    %v1209 = vand.u32 %v1208, 4294901760
    %1210 = vmatpush1.msra.mxu0 %v1209
    %1211 = vmatprep.subr.mxu0 0.0
    %v1212 = vand.u32 %v61, 4294901760
    %v1213 = vsub.f32 %v61, %v1212
    %v1214 = vand.u32 %v1213, 4294901760
    %v1215 = vsub.f32 %v1213, %v1214
    %v1216 = vand.u32 %v1215, 4294901760
    %1217 = vmatpush1.msra.mxu0 %v1216
    %1218 = vmatprep.subr.mxu0 0.0
    %v1219 = vand.u32 %v62, 4294901760
    %v1220 = vsub.f32 %v62, %v1219
    %v1221 = vand.u32 %v1220, 4294901760
    %v1222 = vsub.f32 %v1220, %v1221
    %v1223 = vand.u32 %v1222, 4294901760
    %1224 = vmatpush1.msra.mxu0 %v1223
    %1225 = vmatprep.subr.mxu0 0.0
    %v1226 = vand.u32 %v63, 4294901760
    %v1227 = vsub.f32 %v63, %v1226
    %v1228 = vand.u32 %v1227, 4294901760
    %v1229 = vsub.f32 %v1227, %v1228
    %v1230 = vand.u32 %v1229, 4294901760
    %1231 = vmatpush1.msra.mxu0 %v1230
    %1232 = vmatprep.subr.mxu0 0.0
    %v1233 = vand.u32 %v64, 4294901760
    %v1234 = vsub.f32 %v64, %v1233
    %v1235 = vand.u32 %v1234, 4294901760
    %v1236 = vsub.f32 %v1234, %v1235
    %v1237 = vand.u32 %v1236, 4294901760
    %1238 = vmatpush1.msra.mxu0 %v1237
    %1239 = vmatprep.subr.mxu0 0.0
    %v1240 = vand.u32 %v65, 4294901760
    %v1241 = vsub.f32 %v65, %v1240
    %v1242 = vand.u32 %v1241, 4294901760
    %v1243 = vsub.f32 %v1241, %v1242
    %v1244 = vand.u32 %v1243, 4294901760
    %1245 = vmatpush1.msra.mxu0 %v1244
    %1246 = vmatprep.subr.mxu0 0.0
    %v1247 = vand.u32 %v66, 4294901760
    %v1248 = vsub.f32 %v66, %v1247
    %v1249 = vand.u32 %v1248, 4294901760
    %v1250 = vsub.f32 %v1248, %v1249
    %v1251 = vand.u32 %v1250, 4294901760
    %1252 = vmatpush1.msra.mxu0 %v1251
    %1253 = vmatprep.subr.mxu0 0.0
    %v1254 = vand.u32 %v67, 4294901760
    %v1255 = vsub.f32 %v67, %v1254
    %v1256 = vand.u32 %v1255, 4294901760
    %v1257 = vsub.f32 %v1255, %v1256
    %v1258 = vand.u32 %v1257, 4294901760
    %1259 = vmatpush1.msra.mxu0 %v1258
    %1260 = vmatprep.subr.mxu0 0.0
    %v1261 = vand.u32 %v68, 4294901760
    %v1262 = vsub.f32 %v68, %v1261
    %v1263 = vand.u32 %v1262, 4294901760
    %v1264 = vsub.f32 %v1262, %v1263
    %v1265 = vand.u32 %v1264, 4294901760
    %1266 = vmatpush1.msra.mxu0 %v1265
    %1267 = vmatprep.subr.mxu0 0.0
    %v1268 = vand.u32 %v69, 4294901760
    %v1269 = vsub.f32 %v69, %v1268
    %v1270 = vand.u32 %v1269, 4294901760
    %v1271 = vsub.f32 %v1269, %v1270
    %v1272 = vand.u32 %v1271, 4294901760
    %1273 = vmatpush1.msra.mxu0 %v1272
    %1274 = vmatprep.subr.mxu0 0.0
    %v1275 = vand.u32 %v70, 4294901760
    %v1276 = vsub.f32 %v70, %v1275
    %v1277 = vand.u32 %v1276, 4294901760
    %v1278 = vsub.f32 %v1276, %v1277
    %v1279 = vand.u32 %v1278, 4294901760
    %1280 = vmatpush1.msra.mxu0 %v1279
    %1281 = vmatprep.subr.mxu0 0.0
    %v1282 = vand.u32 %v71, 4294901760
    %v1283 = vsub.f32 %v71, %v1282
    %v1284 = vand.u32 %v1283, 4294901760
    %v1285 = vsub.f32 %v1283, %v1284
    %v1286 = vand.u32 %v1285, 4294901760
    %1287 = vmatpush1.msra.mxu0 %v1286
    %1288 = vmatprep.subr.mxu0 0.0
    %v1289 = vand.u32 %v72, 4294901760
    %v1290 = vsub.f32 %v72, %v1289
    %v1291 = vand.u32 %v1290, 4294901760
    %v1292 = vsub.f32 %v1290, %v1291
    %v1293 = vand.u32 %v1292, 4294901760
    %1294 = vmatpush1.msra.mxu0 %v1293
    %1295 = vmatprep.subr.mxu0 0.0
    %v1296 = vand.u32 %v73, 4294901760
    %v1297 = vsub.f32 %v73, %v1296
    %v1298 = vand.u32 %v1297, 4294901760
    %v1299 = vsub.f32 %v1297, %v1298
    %v1300 = vand.u32 %v1299, 4294901760
    %1301 = vmatpush1.msra.mxu0 %v1300
    %1302 = vmatprep.subr.mxu0 0.0
    %v1303 = vand.u32 %v74, 4294901760
    %v1304 = vsub.f32 %v74, %v1303
    %v1305 = vand.u32 %v1304, 4294901760
    %v1306 = vsub.f32 %v1304, %v1305
    %v1307 = vand.u32 %v1306, 4294901760
    %1308 = vmatpush1.msra.mxu0 %v1307
    %1309 = vmatprep.subr.mxu0 0.0
    %v1310 = vand.u32 %v75, 4294901760
    %v1311 = vsub.f32 %v75, %v1310
    %v1312 = vand.u32 %v1311, 4294901760
    %v1313 = vsub.f32 %v1311, %v1312
    %v1314 = vand.u32 %v1313, 4294901760
    %1315 = vmatpush1.msra.mxu0 %v1314
    %1316 = vmatprep.subr.mxu0 0.0
    %v1317 = vand.u32 %v76, 4294901760
    %v1318 = vsub.f32 %v76, %v1317
    %v1319 = vand.u32 %v1318, 4294901760
    %v1320 = vsub.f32 %v1318, %v1319
    %v1321 = vand.u32 %v1320, 4294901760
    %1322 = vmatpush1.msra.mxu0 %v1321
    %1323 = vmatprep.subr.mxu0 0.0
    %v1324 = vand.u32 %v77, 4294901760
    %v1325 = vsub.f32 %v77, %v1324
    %v1326 = vand.u32 %v1325, 4294901760
    %v1327 = vsub.f32 %v1325, %v1326
    %v1328 = vand.u32 %v1327, 4294901760
    %1329 = vmatpush1.msra.mxu0 %v1328
    %1330 = vmatprep.subr.mxu0 0.0
    %v1331 = vand.u32 %v78, 4294901760
    %v1332 = vsub.f32 %v78, %v1331
    %v1333 = vand.u32 %v1332, 4294901760
    %v1334 = vsub.f32 %v1332, %v1333
    %v1335 = vand.u32 %v1334, 4294901760
    %1336 = vmatpush1.msra.mxu0 %v1335
    %1337 = vmatprep.subr.mxu0 0.0
    %v1338 = vand.u32 %v79, 4294901760
    %v1339 = vsub.f32 %v79, %v1338
    %v1340 = vand.u32 %v1339, 4294901760
    %v1341 = vsub.f32 %v1339, %v1340
    %v1342 = vand.u32 %v1341, 4294901760
    %1343 = vmatpush1.msra.mxu0 %v1342
    %1344 = vmatprep.subr.mxu0 0.0
    %v1345 = vand.u32 %v80, 4294901760
    %v1346 = vsub.f32 %v80, %v1345
    %v1347 = vand.u32 %v1346, 4294901760
    %v1348 = vsub.f32 %v1346, %v1347
    %v1349 = vand.u32 %v1348, 4294901760
    %1350 = vmatpush1.msra.mxu0 %v1349
    %v1351 = vand.u32 %v138, 4294901760
    %1352 = vmatprep.mubr.f32.mxu0 %v1351
    %v1353 = vand.u32 %v136, 4294901760
    %1354 = vmatmul.mubr.f32.gmra.mrb[0].mxu0 %v1353
    %v1355 = vpop.f32.mrb[0].mxu0
    %v1356 = vadd.f32 %v1124, %v1355
    %v1357 = vpop.f32.mrb[0].mxu0
    %1358 = vdwg.mxu0
    %1359 = vmatprep.subr.mxu0 0.0
    %v1360 = vand.u32 %v49, 4294901760
    %v1361 = vsub.f32 %v49, %v1360
    %1362 = vmatpush1.msra.mxu0 %v1361
    %1363 = vmatprep.subr.mxu0 0.0
    %v1364 = vand.u32 %v50, 4294901760
    %v1365 = vsub.f32 %v50, %v1364
    %1366 = vmatpush1.msra.mxu0 %v1365
    %1367 = vmatprep.subr.mxu0 0.0
    %v1368 = vand.u32 %v51, 4294901760
    %v1369 = vsub.f32 %v51, %v1368
    %1370 = vmatpush1.msra.mxu0 %v1369
    %1371 = vmatprep.subr.mxu0 0.0
    %v1372 = vand.u32 %v52, 4294901760
    %v1373 = vsub.f32 %v52, %v1372
    %1374 = vmatpush1.msra.mxu0 %v1373
    %1375 = vmatprep.subr.mxu0 0.0
    %v1376 = vand.u32 %v53, 4294901760
    %v1377 = vsub.f32 %v53, %v1376
    %1378 = vmatpush1.msra.mxu0 %v1377
    %1379 = vmatprep.subr.mxu0 0.0
    %v1380 = vand.u32 %v54, 4294901760
    %v1381 = vsub.f32 %v54, %v1380
    %1382 = vmatpush1.msra.mxu0 %v1381
    %1383 = vmatprep.subr.mxu0 0.0
    %v1384 = vand.u32 %v55, 4294901760
    %v1385 = vsub.f32 %v55, %v1384
    %1386 = vmatpush1.msra.mxu0 %v1385
    %1387 = vmatprep.subr.mxu0 0.0
    %v1388 = vand.u32 %v56, 4294901760
    %v1389 = vsub.f32 %v56, %v1388
    %1390 = vmatpush1.msra.mxu0 %v1389
    %1391 = vmatprep.subr.mxu0 0.0
    %v1392 = vand.u32 %v57, 4294901760
    %v1393 = vsub.f32 %v57, %v1392
    %1394 = vmatpush1.msra.mxu0 %v1393
    %1395 = vmatprep.subr.mxu0 0.0
    %v1396 = vand.u32 %v58, 4294901760
    %v1397 = vsub.f32 %v58, %v1396
    %1398 = vmatpush1.msra.mxu0 %v1397
    %1399 = vmatprep.subr.mxu0 0.0
    %v1400 = vand.u32 %v59, 4294901760
    %v1401 = vsub.f32 %v59, %v1400
    %1402 = vmatpush1.msra.mxu0 %v1401
    %1403 = vmatprep.subr.mxu0 0.0
    %v1404 = vand.u32 %v60, 4294901760
    %v1405 = vsub.f32 %v60, %v1404
    %1406 = vmatpush1.msra.mxu0 %v1405
    %1407 = vmatprep.subr.mxu0 0.0
    %v1408 = vand.u32 %v61, 4294901760
    %v1409 = vsub.f32 %v61, %v1408
    %1410 = vmatpush1.msra.mxu0 %v1409
    %1411 = vmatprep.subr.mxu0 0.0
    %v1412 = vand.u32 %v62, 4294901760
    %v1413 = vsub.f32 %v62, %v1412
    %1414 = vmatpush1.msra.mxu0 %v1413
    %1415 = vmatprep.subr.mxu0 0.0
    %v1416 = vand.u32 %v63, 4294901760
    %v1417 = vsub.f32 %v63, %v1416
    %1418 = vmatpush1.msra.mxu0 %v1417
    %1419 = vmatprep.subr.mxu0 0.0
    %v1420 = vand.u32 %v64, 4294901760
    %v1421 = vsub.f32 %v64, %v1420
    %1422 = vmatpush1.msra.mxu0 %v1421
    %1423 = vmatprep.subr.mxu0 0.0
    %v1424 = vand.u32 %v65, 4294901760
    %v1425 = vsub.f32 %v65, %v1424
    %1426 = vmatpush1.msra.mxu0 %v1425
    %1427 = vmatprep.subr.mxu0 0.0
    %v1428 = vand.u32 %v66, 4294901760
    %v1429 = vsub.f32 %v66, %v1428
    %1430 = vmatpush1.msra.mxu0 %v1429
    %1431 = vmatprep.subr.mxu0 0.0
    %v1432 = vand.u32 %v67, 4294901760
    %v1433 = vsub.f32 %v67, %v1432
    %1434 = vmatpush1.msra.mxu0 %v1433
    %1435 = vmatprep.subr.mxu0 0.0
    %v1436 = vand.u32 %v68, 4294901760
    %v1437 = vsub.f32 %v68, %v1436
    %1438 = vmatpush1.msra.mxu0 %v1437
    %1439 = vmatprep.subr.mxu0 0.0
    %v1440 = vand.u32 %v69, 4294901760
    %v1441 = vsub.f32 %v69, %v1440
    %1442 = vmatpush1.msra.mxu0 %v1441
    %1443 = vmatprep.subr.mxu0 0.0
    %v1444 = vand.u32 %v70, 4294901760
    %v1445 = vsub.f32 %v70, %v1444
    %1446 = vmatpush1.msra.mxu0 %v1445
    %1447 = vmatprep.subr.mxu0 0.0
    %v1448 = vand.u32 %v71, 4294901760
    %v1449 = vsub.f32 %v71, %v1448
    %1450 = vmatpush1.msra.mxu0 %v1449
    %1451 = vmatprep.subr.mxu0 0.0
    %v1452 = vand.u32 %v72, 4294901760
    %v1453 = vsub.f32 %v72, %v1452
    %1454 = vmatpush1.msra.mxu0 %v1453
    %1455 = vmatprep.subr.mxu0 0.0
    %v1456 = vand.u32 %v73, 4294901760
    %v1457 = vsub.f32 %v73, %v1456
    %1458 = vmatpush1.msra.mxu0 %v1457
    %1459 = vmatprep.subr.mxu0 0.0
    %v1460 = vand.u32 %v74, 4294901760
    %v1461 = vsub.f32 %v74, %v1460
    %1462 = vmatpush1.msra.mxu0 %v1461
    %1463 = vmatprep.subr.mxu0 0.0
    %v1464 = vand.u32 %v75, 4294901760
    %v1465 = vsub.f32 %v75, %v1464
    %1466 = vmatpush1.msra.mxu0 %v1465
    %1467 = vmatprep.subr.mxu0 0.0
    %v1468 = vand.u32 %v76, 4294901760
    %v1469 = vsub.f32 %v76, %v1468
    %1470 = vmatpush1.msra.mxu0 %v1469
    %1471 = vmatprep.subr.mxu0 0.0
    %v1472 = vand.u32 %v77, 4294901760
    %v1473 = vsub.f32 %v77, %v1472
    %1474 = vmatpush1.msra.mxu0 %v1473
    %1475 = vmatprep.subr.mxu0 0.0
    %v1476 = vand.u32 %v78, 4294901760
    %v1477 = vsub.f32 %v78, %v1476
    %1478 = vmatpush1.msra.mxu0 %v1477
    %1479 = vmatprep.subr.mxu0 0.0
    %v1480 = vand.u32 %v79, 4294901760
    %v1481 = vsub.f32 %v79, %v1480
    %1482 = vmatpush1.msra.mxu0 %v1481
    %1483 = vmatprep.subr.mxu0 0.0
    %v1484 = vand.u32 %v80, 4294901760
    %v1485 = vsub.f32 %v80, %v1484
    %1486 = vmatpush1.msra.mxu0 %v1485
    %v1487 = vand.u32 %v138, 4294901760
    %v1488 = vsub.f32 %v138, %v1487
    %1489 = vmatprep.mubr.f32.mxu0 %v1488
    %v1490 = vand.u32 %v136, 4294901760
    %v1491 = vsub.f32 %v136, %v1490
    %1492 = vmatmul.mubr.f32.gmra.mrb[0].mxu0 %v1491
    %v1493 = vpop.f32.mrb[0].mxu0
    %v1494 = vadd.f32 %v1356, %v1493
    %v1495 = vpop.f32.mrb[0].mxu0
    %1496 = vdwg.mxu0
    %1497 = vmatprep.subr.mxu0 0.0
    %v1498 = vand.u32 %v49, 4294901760
    %1499 = vmatpush1.msra.mxu0 %v1498
    %1500 = vmatprep.subr.mxu0 0.0
    %v1501 = vand.u32 %v50, 4294901760
    %1502 = vmatpush1.msra.mxu0 %v1501
    %1503 = vmatprep.subr.mxu0 0.0
    %v1504 = vand.u32 %v51, 4294901760
    %1505 = vmatpush1.msra.mxu0 %v1504
    %1506 = vmatprep.subr.mxu0 0.0
    %v1507 = vand.u32 %v52, 4294901760
    %1508 = vmatpush1.msra.mxu0 %v1507
    %1509 = vmatprep.subr.mxu0 0.0
    %v1510 = vand.u32 %v53, 4294901760
    %1511 = vmatpush1.msra.mxu0 %v1510
    %1512 = vmatprep.subr.mxu0 0.0
    %v1513 = vand.u32 %v54, 4294901760
    %1514 = vmatpush1.msra.mxu0 %v1513
    %1515 = vmatprep.subr.mxu0 0.0
    %v1516 = vand.u32 %v55, 4294901760
    %1517 = vmatpush1.msra.mxu0 %v1516
    %1518 = vmatprep.subr.mxu0 0.0
    %v1519 = vand.u32 %v56, 4294901760
    %1520 = vmatpush1.msra.mxu0 %v1519
    %1521 = vmatprep.subr.mxu0 0.0
    %v1522 = vand.u32 %v57, 4294901760
    %1523 = vmatpush1.msra.mxu0 %v1522
    %1524 = vmatprep.subr.mxu0 0.0
    %v1525 = vand.u32 %v58, 4294901760
    %1526 = vmatpush1.msra.mxu0 %v1525
    %1527 = vmatprep.subr.mxu0 0.0
    %v1528 = vand.u32 %v59, 4294901760
    %1529 = vmatpush1.msra.mxu0 %v1528
    %1530 = vmatprep.subr.mxu0 0.0
    %v1531 = vand.u32 %v60, 4294901760
    %1532 = vmatpush1.msra.mxu0 %v1531
    %1533 = vmatprep.subr.mxu0 0.0
    %v1534 = vand.u32 %v61, 4294901760
    %1535 = vmatpush1.msra.mxu0 %v1534
    %1536 = vmatprep.subr.mxu0 0.0
    %v1537 = vand.u32 %v62, 4294901760
    %1538 = vmatpush1.msra.mxu0 %v1537
    %1539 = vmatprep.subr.mxu0 0.0
    %v1540 = vand.u32 %v63, 4294901760
    %1541 = vmatpush1.msra.mxu0 %v1540
    %1542 = vmatprep.subr.mxu0 0.0
    %v1543 = vand.u32 %v64, 4294901760
    %1544 = vmatpush1.msra.mxu0 %v1543
    %1545 = vmatprep.subr.mxu0 0.0
    %v1546 = vand.u32 %v65, 4294901760
    %1547 = vmatpush1.msra.mxu0 %v1546
    %1548 = vmatprep.subr.mxu0 0.0
    %v1549 = vand.u32 %v66, 4294901760
    %1550 = vmatpush1.msra.mxu0 %v1549
    %1551 = vmatprep.subr.mxu0 0.0
    %v1552 = vand.u32 %v67, 4294901760
    %1553 = vmatpush1.msra.mxu0 %v1552
    %1554 = vmatprep.subr.mxu0 0.0
    %v1555 = vand.u32 %v68, 4294901760
    %1556 = vmatpush1.msra.mxu0 %v1555
    %1557 = vmatprep.subr.mxu0 0.0
    %v1558 = vand.u32 %v69, 4294901760
    %1559 = vmatpush1.msra.mxu0 %v1558
    %1560 = vmatprep.subr.mxu0 0.0
    %v1561 = vand.u32 %v70, 4294901760
    %1562 = vmatpush1.msra.mxu0 %v1561
    %1563 = vmatprep.subr.mxu0 0.0
    %v1564 = vand.u32 %v71, 4294901760
    %1565 = vmatpush1.msra.mxu0 %v1564
    %1566 = vmatprep.subr.mxu0 0.0
    %v1567 = vand.u32 %v72, 4294901760
    %1568 = vmatpush1.msra.mxu0 %v1567
    %1569 = vmatprep.subr.mxu0 0.0
    %v1570 = vand.u32 %v73, 4294901760
    %1571 = vmatpush1.msra.mxu0 %v1570
    %1572 = vmatprep.subr.mxu0 0.0
    %v1573 = vand.u32 %v74, 4294901760
    %1574 = vmatpush1.msra.mxu0 %v1573
    %1575 = vmatprep.subr.mxu0 0.0
    %v1576 = vand.u32 %v75, 4294901760
    %1577 = vmatpush1.msra.mxu0 %v1576
    %1578 = vmatprep.subr.mxu0 0.0
    %v1579 = vand.u32 %v76, 4294901760
    %1580 = vmatpush1.msra.mxu0 %v1579
    %1581 = vmatprep.subr.mxu0 0.0
    %v1582 = vand.u32 %v77, 4294901760
    %1583 = vmatpush1.msra.mxu0 %v1582
    %1584 = vmatprep.subr.mxu0 0.0
    %v1585 = vand.u32 %v78, 4294901760
    %1586 = vmatpush1.msra.mxu0 %v1585
    %1587 = vmatprep.subr.mxu0 0.0
    %v1588 = vand.u32 %v79, 4294901760
    %1589 = vmatpush1.msra.mxu0 %v1588
    %1590 = vmatprep.subr.mxu0 0.0
    %v1591 = vand.u32 %v80, 4294901760
    %1592 = vmatpush1.msra.mxu0 %v1591
    %v1593 = vand.u32 %v138, 4294901760
    %v1594 = vsub.f32 %v138, %v1593
    %v1595 = vand.u32 %v1594, 4294901760
    %1596 = vmatprep.mubr.f32.mxu0 %v1595
    %v1597 = vand.u32 %v136, 4294901760
    %v1598 = vsub.f32 %v136, %v1597
    %v1599 = vand.u32 %v1598, 4294901760
    %1600 = vmatmul.mubr.f32.gmra.mrb[0].mxu0 %v1599
    %v1601 = vpop.f32.mrb[0].mxu0
    %v1602 = vadd.f32 %v1494, %v1601
    %v1603 = vpop.f32.mrb[0].mxu0
    %1604 = vdwg.mxu0
    %1605 = vmatprep.subr.mxu0 0.0
    %v1606 = vand.u32 %v49, 4294901760
    %v1607 = vsub.f32 %v49, %v1606
    %v1608 = vand.u32 %v1607, 4294901760
    %1609 = vmatpush1.msra.mxu0 %v1608
    %1610 = vmatprep.subr.mxu0 0.0
    %v1611 = vand.u32 %v50, 4294901760
    %v1612 = vsub.f32 %v50, %v1611
    %v1613 = vand.u32 %v1612, 4294901760
    %1614 = vmatpush1.msra.mxu0 %v1613
    %1615 = vmatprep.subr.mxu0 0.0
    %v1616 = vand.u32 %v51, 4294901760
    %v1617 = vsub.f32 %v51, %v1616
    %v1618 = vand.u32 %v1617, 4294901760
    %1619 = vmatpush1.msra.mxu0 %v1618
    %1620 = vmatprep.subr.mxu0 0.0
    %v1621 = vand.u32 %v52, 4294901760
    %v1622 = vsub.f32 %v52, %v1621
    %v1623 = vand.u32 %v1622, 4294901760
    %1624 = vmatpush1.msra.mxu0 %v1623
    %1625 = vmatprep.subr.mxu0 0.0
    %v1626 = vand.u32 %v53, 4294901760
    %v1627 = vsub.f32 %v53, %v1626
    %v1628 = vand.u32 %v1627, 4294901760
    %1629 = vmatpush1.msra.mxu0 %v1628
    %1630 = vmatprep.subr.mxu0 0.0
    %v1631 = vand.u32 %v54, 4294901760
    %v1632 = vsub.f32 %v54, %v1631
    %v1633 = vand.u32 %v1632, 4294901760
    %1634 = vmatpush1.msra.mxu0 %v1633
    %1635 = vmatprep.subr.mxu0 0.0
    %v1636 = vand.u32 %v55, 4294901760
    %v1637 = vsub.f32 %v55, %v1636
    %v1638 = vand.u32 %v1637, 4294901760
    %1639 = vmatpush1.msra.mxu0 %v1638
    %1640 = vmatprep.subr.mxu0 0.0
    %v1641 = vand.u32 %v56, 4294901760
    %v1642 = vsub.f32 %v56, %v1641
    %v1643 = vand.u32 %v1642, 4294901760
    %1644 = vmatpush1.msra.mxu0 %v1643
    %1645 = vmatprep.subr.mxu0 0.0
    %v1646 = vand.u32 %v57, 4294901760
    %v1647 = vsub.f32 %v57, %v1646
    %v1648 = vand.u32 %v1647, 4294901760
    %1649 = vmatpush1.msra.mxu0 %v1648
    %1650 = vmatprep.subr.mxu0 0.0
    %v1651 = vand.u32 %v58, 4294901760
    %v1652 = vsub.f32 %v58, %v1651
    %v1653 = vand.u32 %v1652, 4294901760
    %1654 = vmatpush1.msra.mxu0 %v1653
    %1655 = vmatprep.subr.mxu0 0.0
    %v1656 = vand.u32 %v59, 4294901760
    %v1657 = vsub.f32 %v59, %v1656
    %v1658 = vand.u32 %v1657, 4294901760
    %1659 = vmatpush1.msra.mxu0 %v1658
    %1660 = vmatprep.subr.mxu0 0.0
    %v1661 = vand.u32 %v60, 4294901760
    %v1662 = vsub.f32 %v60, %v1661
    %v1663 = vand.u32 %v1662, 4294901760
    %1664 = vmatpush1.msra.mxu0 %v1663
    %1665 = vmatprep.subr.mxu0 0.0
    %v1666 = vand.u32 %v61, 4294901760
    %v1667 = vsub.f32 %v61, %v1666
    %v1668 = vand.u32 %v1667, 4294901760
    %1669 = vmatpush1.msra.mxu0 %v1668
    %1670 = vmatprep.subr.mxu0 0.0
    %v1671 = vand.u32 %v62, 4294901760
    %v1672 = vsub.f32 %v62, %v1671
    %v1673 = vand.u32 %v1672, 4294901760
    %1674 = vmatpush1.msra.mxu0 %v1673
    %1675 = vmatprep.subr.mxu0 0.0
    %v1676 = vand.u32 %v63, 4294901760
    %v1677 = vsub.f32 %v63, %v1676
    %v1678 = vand.u32 %v1677, 4294901760
    %1679 = vmatpush1.msra.mxu0 %v1678
    %1680 = vmatprep.subr.mxu0 0.0
    %v1681 = vand.u32 %v64, 4294901760
    %v1682 = vsub.f32 %v64, %v1681
    %v1683 = vand.u32 %v1682, 4294901760
    %1684 = vmatpush1.msra.mxu0 %v1683
    %1685 = vmatprep.subr.mxu0 0.0
    %v1686 = vand.u32 %v65, 4294901760
    %v1687 = vsub.f32 %v65, %v1686
    %v1688 = vand.u32 %v1687, 4294901760
    %1689 = vmatpush1.msra.mxu0 %v1688
    %1690 = vmatprep.subr.mxu0 0.0
    %v1691 = vand.u32 %v66, 4294901760
    %v1692 = vsub.f32 %v66, %v1691
    %v1693 = vand.u32 %v1692, 4294901760
    %1694 = vmatpush1.msra.mxu0 %v1693
    %1695 = vmatprep.subr.mxu0 0.0
    %v1696 = vand.u32 %v67, 4294901760
    %v1697 = vsub.f32 %v67, %v1696
    %v1698 = vand.u32 %v1697, 4294901760
    %1699 = vmatpush1.msra.mxu0 %v1698
    %1700 = vmatprep.subr.mxu0 0.0
    %v1701 = vand.u32 %v68, 4294901760
    %v1702 = vsub.f32 %v68, %v1701
    %v1703 = vand.u32 %v1702, 4294901760
    %1704 = vmatpush1.msra.mxu0 %v1703
    %1705 = vmatprep.subr.mxu0 0.0
    %v1706 = vand.u32 %v69, 4294901760
    %v1707 = vsub.f32 %v69, %v1706
    %v1708 = vand.u32 %v1707, 4294901760
    %1709 = vmatpush1.msra.mxu0 %v1708
    %1710 = vmatprep.subr.mxu0 0.0
    %v1711 = vand.u32 %v70, 4294901760
    %v1712 = vsub.f32 %v70, %v1711
    %v1713 = vand.u32 %v1712, 4294901760
    %1714 = vmatpush1.msra.mxu0 %v1713
    %1715 = vmatprep.subr.mxu0 0.0
    %v1716 = vand.u32 %v71, 4294901760
    %v1717 = vsub.f32 %v71, %v1716
    %v1718 = vand.u32 %v1717, 4294901760
    %1719 = vmatpush1.msra.mxu0 %v1718
    %1720 = vmatprep.subr.mxu0 0.0
    %v1721 = vand.u32 %v72, 4294901760
    %v1722 = vsub.f32 %v72, %v1721
    %v1723 = vand.u32 %v1722, 4294901760
    %1724 = vmatpush1.msra.mxu0 %v1723
    %1725 = vmatprep.subr.mxu0 0.0
    %v1726 = vand.u32 %v73, 4294901760
    %v1727 = vsub.f32 %v73, %v1726
    %v1728 = vand.u32 %v1727, 4294901760
    %1729 = vmatpush1.msra.mxu0 %v1728
    %1730 = vmatprep.subr.mxu0 0.0
    %v1731 = vand.u32 %v74, 4294901760
    %v1732 = vsub.f32 %v74, %v1731
    %v1733 = vand.u32 %v1732, 4294901760
    %1734 = vmatpush1.msra.mxu0 %v1733
    %1735 = vmatprep.subr.mxu0 0.0
    %v1736 = vand.u32 %v75, 4294901760
    %v1737 = vsub.f32 %v75, %v1736
    %v1738 = vand.u32 %v1737, 4294901760
    %1739 = vmatpush1.msra.mxu0 %v1738
    %1740 = vmatprep.subr.mxu0 0.0
    %v1741 = vand.u32 %v76, 4294901760
    %v1742 = vsub.f32 %v76, %v1741
    %v1743 = vand.u32 %v1742, 4294901760
    %1744 = vmatpush1.msra.mxu0 %v1743
    %1745 = vmatprep.subr.mxu0 0.0
    %v1746 = vand.u32 %v77, 4294901760
    %v1747 = vsub.f32 %v77, %v1746
    %v1748 = vand.u32 %v1747, 4294901760
    %1749 = vmatpush1.msra.mxu0 %v1748
    %1750 = vmatprep.subr.mxu0 0.0
    %v1751 = vand.u32 %v78, 4294901760
    %v1752 = vsub.f32 %v78, %v1751
    %v1753 = vand.u32 %v1752, 4294901760
    %1754 = vmatpush1.msra.mxu0 %v1753
    %1755 = vmatprep.subr.mxu0 0.0
    %v1756 = vand.u32 %v79, 4294901760
    %v1757 = vsub.f32 %v79, %v1756
    %v1758 = vand.u32 %v1757, 4294901760
    %1759 = vmatpush1.msra.mxu0 %v1758
    %1760 = vmatprep.subr.mxu0 0.0
    %v1761 = vand.u32 %v80, 4294901760
    %v1762 = vsub.f32 %v80, %v1761
    %v1763 = vand.u32 %v1762, 4294901760
    %1764 = vmatpush1.msra.mxu0 %v1763
    %v1765 = vand.u32 %v138, 4294901760
    %1766 = vmatprep.mubr.f32.mxu0 %v1765
    %v1767 = vand.u32 %v136, 4294901760
    %1768 = vmatmul.mubr.f32.gmra.mrb[0].mxu0 %v1767
    %v1769 = vpop.f32.mrb[0].mxu0
    %v1770 = vadd.f32 %v1602, %v1769
    %v1771 = vpop.f32.mrb[0].mxu0
    %1772 = vdwg.mxu0
    %1773 = vmatprep.subr.mxu0 0.0
    %v1774 = vand.u32 %v49, 4294901760
    %1775 = vmatpush1.msra.mxu0 %v1774
    %1776 = vmatprep.subr.mxu0 0.0
    %v1777 = vand.u32 %v50, 4294901760
    %1778 = vmatpush1.msra.mxu0 %v1777
    %1779 = vmatprep.subr.mxu0 0.0
    %v1780 = vand.u32 %v51, 4294901760
    %1781 = vmatpush1.msra.mxu0 %v1780
    %1782 = vmatprep.subr.mxu0 0.0
    %v1783 = vand.u32 %v52, 4294901760
    %1784 = vmatpush1.msra.mxu0 %v1783
    %1785 = vmatprep.subr.mxu0 0.0
    %v1786 = vand.u32 %v53, 4294901760
    %1787 = vmatpush1.msra.mxu0 %v1786
    %1788 = vmatprep.subr.mxu0 0.0
    %v1789 = vand.u32 %v54, 4294901760
    %1790 = vmatpush1.msra.mxu0 %v1789
    %1791 = vmatprep.subr.mxu0 0.0
    %v1792 = vand.u32 %v55, 4294901760
    %1793 = vmatpush1.msra.mxu0 %v1792
    %1794 = vmatprep.subr.mxu0 0.0
    %v1795 = vand.u32 %v56, 4294901760
    %1796 = vmatpush1.msra.mxu0 %v1795
    %1797 = vmatprep.subr.mxu0 0.0
    %v1798 = vand.u32 %v57, 4294901760
    %1799 = vmatpush1.msra.mxu0 %v1798
    %1800 = vmatprep.subr.mxu0 0.0
    %v1801 = vand.u32 %v58, 4294901760
    %1802 = vmatpush1.msra.mxu0 %v1801
    %1803 = vmatprep.subr.mxu0 0.0
    %v1804 = vand.u32 %v59, 4294901760
    %1805 = vmatpush1.msra.mxu0 %v1804
    %1806 = vmatprep.subr.mxu0 0.0
    %v1807 = vand.u32 %v60, 4294901760
    %1808 = vmatpush1.msra.mxu0 %v1807
    %1809 = vmatprep.subr.mxu0 0.0
    %v1810 = vand.u32 %v61, 4294901760
    %1811 = vmatpush1.msra.mxu0 %v1810
    %1812 = vmatprep.subr.mxu0 0.0
    %v1813 = vand.u32 %v62, 4294901760
    %1814 = vmatpush1.msra.mxu0 %v1813
    %1815 = vmatprep.subr.mxu0 0.0
    %v1816 = vand.u32 %v63, 4294901760
    %1817 = vmatpush1.msra.mxu0 %v1816
    %1818 = vmatprep.subr.mxu0 0.0
    %v1819 = vand.u32 %v64, 4294901760
    %1820 = vmatpush1.msra.mxu0 %v1819
    %1821 = vmatprep.subr.mxu0 0.0
    %v1822 = vand.u32 %v65, 4294901760
    %1823 = vmatpush1.msra.mxu0 %v1822
    %1824 = vmatprep.subr.mxu0 0.0
    %v1825 = vand.u32 %v66, 4294901760
    %1826 = vmatpush1.msra.mxu0 %v1825
    %1827 = vmatprep.subr.mxu0 0.0
    %v1828 = vand.u32 %v67, 4294901760
    %1829 = vmatpush1.msra.mxu0 %v1828
    %1830 = vmatprep.subr.mxu0 0.0
    %v1831 = vand.u32 %v68, 4294901760
    %1832 = vmatpush1.msra.mxu0 %v1831
    %1833 = vmatprep.subr.mxu0 0.0
    %v1834 = vand.u32 %v69, 4294901760
    %1835 = vmatpush1.msra.mxu0 %v1834
    %1836 = vmatprep.subr.mxu0 0.0
    %v1837 = vand.u32 %v70, 4294901760
    %1838 = vmatpush1.msra.mxu0 %v1837
    %1839 = vmatprep.subr.mxu0 0.0
    %v1840 = vand.u32 %v71, 4294901760
    %1841 = vmatpush1.msra.mxu0 %v1840
    %1842 = vmatprep.subr.mxu0 0.0
    %v1843 = vand.u32 %v72, 4294901760
    %1844 = vmatpush1.msra.mxu0 %v1843
    %1845 = vmatprep.subr.mxu0 0.0
    %v1846 = vand.u32 %v73, 4294901760
    %1847 = vmatpush1.msra.mxu0 %v1846
    %1848 = vmatprep.subr.mxu0 0.0
    %v1849 = vand.u32 %v74, 4294901760
    %1850 = vmatpush1.msra.mxu0 %v1849
    %1851 = vmatprep.subr.mxu0 0.0
    %v1852 = vand.u32 %v75, 4294901760
    %1853 = vmatpush1.msra.mxu0 %v1852
    %1854 = vmatprep.subr.mxu0 0.0
    %v1855 = vand.u32 %v76, 4294901760
    %1856 = vmatpush1.msra.mxu0 %v1855
    %1857 = vmatprep.subr.mxu0 0.0
    %v1858 = vand.u32 %v77, 4294901760
    %1859 = vmatpush1.msra.mxu0 %v1858
    %1860 = vmatprep.subr.mxu0 0.0
    %v1861 = vand.u32 %v78, 4294901760
    %1862 = vmatpush1.msra.mxu0 %v1861
    %1863 = vmatprep.subr.mxu0 0.0
    %v1864 = vand.u32 %v79, 4294901760
    %1865 = vmatpush1.msra.mxu0 %v1864
    %1866 = vmatprep.subr.mxu0 0.0
    %v1867 = vand.u32 %v80, 4294901760
    %1868 = vmatpush1.msra.mxu0 %v1867
    %v1869 = vand.u32 %v138, 4294901760
    %1870 = vmatprep.mubr.f32.mxu0 %v1869
    %v1871 = vand.u32 %v136, 4294901760
    %1872 = vmatmul.mubr.f32.gmra.mrb[0].mxu0 %v1871
    %v1873 = vpop.f32.mrb[0].mxu0
    %v1874 = vadd.f32 %v1770, %v1873
    %v1875 = vpop.f32.mrb[0].mxu0
    %1876 = vdwg.mxu0
    %1877 = vmatprep.subr.mxu0 0.0
    %v1878 = vand.u32 %v81, 4294901760
    %1879 = vmatpush1.msra.mxu0 %v1878
    %1880 = vmatprep.subr.mxu0 0.0
    %v1881 = vand.u32 %v82, 4294901760
    %1882 = vmatpush1.msra.mxu0 %v1881
    %1883 = vmatprep.subr.mxu0 0.0
    %v1884 = vand.u32 %v83, 4294901760
    %1885 = vmatpush1.msra.mxu0 %v1884
    %1886 = vmatprep.subr.mxu0 0.0
    %v1887 = vand.u32 %v84, 4294901760
    %1888 = vmatpush1.msra.mxu0 %v1887
    %1889 = vmatprep.subr.mxu0 0.0
    %v1890 = vand.u32 %v85, 4294901760
    %1891 = vmatpush1.msra.mxu0 %v1890
    %1892 = vmatprep.subr.mxu0 0.0
    %v1893 = vand.u32 %v86, 4294901760
    %1894 = vmatpush1.msra.mxu0 %v1893
    %1895 = vmatprep.subr.mxu0 0.0
    %v1896 = vand.u32 %v87, 4294901760
    %1897 = vmatpush1.msra.mxu0 %v1896
    %1898 = vmatprep.subr.mxu0 0.0
    %v1899 = vand.u32 %v88, 4294901760
    %1900 = vmatpush1.msra.mxu0 %v1899
    %1901 = vmatprep.subr.mxu0 0.0
    %v1902 = vand.u32 %v89, 4294901760
    %1903 = vmatpush1.msra.mxu0 %v1902
    %1904 = vmatprep.subr.mxu0 0.0
    %v1905 = vand.u32 %v90, 4294901760
    %1906 = vmatpush1.msra.mxu0 %v1905
    %1907 = vmatprep.subr.mxu0 0.0
    %v1908 = vand.u32 %v91, 4294901760
    %1909 = vmatpush1.msra.mxu0 %v1908
    %1910 = vmatprep.subr.mxu0 0.0
    %v1911 = vand.u32 %v92, 4294901760
    %1912 = vmatpush1.msra.mxu0 %v1911
    %1913 = vmatprep.subr.mxu0 0.0
    %v1914 = vand.u32 %v93, 4294901760
    %1915 = vmatpush1.msra.mxu0 %v1914
    %1916 = vmatprep.subr.mxu0 0.0
    %v1917 = vand.u32 %v94, 4294901760
    %1918 = vmatpush1.msra.mxu0 %v1917
    %1919 = vmatprep.subr.mxu0 0.0
    %v1920 = vand.u32 %v95, 4294901760
    %1921 = vmatpush1.msra.mxu0 %v1920
    %1922 = vmatprep.subr.mxu0 0.0
    %v1923 = vand.u32 %v96, 4294901760
    %1924 = vmatpush1.msra.mxu0 %v1923
    %1925 = vmatprep.subr.mxu0 0.0
    %v1926 = vand.u32 %v97, 4294901760
    %1927 = vmatpush1.msra.mxu0 %v1926
    %1928 = vmatprep.subr.mxu0 0.0
    %v1929 = vand.u32 %v98, 4294901760
    %1930 = vmatpush1.msra.mxu0 %v1929
    %1931 = vmatprep.subr.mxu0 0.0
    %v1932 = vand.u32 %v99, 4294901760
    %1933 = vmatpush1.msra.mxu0 %v1932
    %1934 = vmatprep.subr.mxu0 0.0
    %v1935 = vand.u32 %v100, 4294901760
    %1936 = vmatpush1.msra.mxu0 %v1935
    %1937 = vmatprep.subr.mxu0 0.0
    %v1938 = vand.u32 %v101, 4294901760
    %1939 = vmatpush1.msra.mxu0 %v1938
    %1940 = vmatprep.subr.mxu0 0.0
    %v1941 = vand.u32 %v102, 4294901760
    %1942 = vmatpush1.msra.mxu0 %v1941
    %1943 = vmatprep.subr.mxu0 0.0
    %v1944 = vand.u32 %v103, 4294901760
    %1945 = vmatpush1.msra.mxu0 %v1944
    %1946 = vmatprep.subr.mxu0 0.0
    %v1947 = vand.u32 %v104, 4294901760
    %1948 = vmatpush1.msra.mxu0 %v1947
    %1949 = vmatprep.subr.mxu0 0.0
    %v1950 = vand.u32 %v105, 4294901760
    %1951 = vmatpush1.msra.mxu0 %v1950
    %1952 = vmatprep.subr.mxu0 0.0
    %v1953 = vand.u32 %v106, 4294901760
    %1954 = vmatpush1.msra.mxu0 %v1953
    %1955 = vmatprep.subr.mxu0 0.0
    %v1956 = vand.u32 %v107, 4294901760
    %1957 = vmatpush1.msra.mxu0 %v1956
    %1958 = vmatprep.subr.mxu0 0.0
    %v1959 = vand.u32 %v108, 4294901760
    %1960 = vmatpush1.msra.mxu0 %v1959
    %1961 = vmatprep.subr.mxu0 0.0
    %v1962 = vand.u32 %v109, 4294901760
    %1963 = vmatpush1.msra.mxu0 %v1962
    %1964 = vmatprep.subr.mxu0 0.0
    %v1965 = vand.u32 %v110, 4294901760
    %1966 = vmatpush1.msra.mxu0 %v1965
    %1967 = vmatprep.subr.mxu0 0.0
    %v1968 = vand.u32 %v111, 4294901760
    %1969 = vmatpush1.msra.mxu0 %v1968
    %1970 = vmatprep.subr.mxu0 0.0
    %v1971 = vand.u32 %v112, 4294901760
    %1972 = vmatpush1.msra.mxu0 %v1971
    %v1973 = vand.u32 %v146, 4294901760
    %v1974 = vsub.f32 %v146, %v1973
    %v1975 = vand.u32 %v1974, 4294901760
    %v1976 = vsub.f32 %v1974, %v1975
    %v1977 = vand.u32 %v1976, 4294901760
    %1978 = vmatprep.mubr.f32.mxu0 %v1977
    %v1979 = vand.u32 %v145, 4294901760
    %v1980 = vsub.f32 %v145, %v1979
    %v1981 = vand.u32 %v1980, 4294901760
    %v1982 = vsub.f32 %v1980, %v1981
    %v1983 = vand.u32 %v1982, 4294901760
    %1984 = vmatmul.mubr.f32.gmra.mrb[0].mxu0 %v1983
    %v1985 = vpop.f32.mrb[0].mxu0
    %v1986 = vadd.f32 %v1874, %v1985
    %v1987 = vpop.f32.mrb[0].mxu0
    %1988 = vdwg.mxu0
    %1989 = vmatprep.subr.mxu0 0.0
    %v1990 = vand.u32 %v81, 4294901760
    %v1991 = vsub.f32 %v81, %v1990
    %v1992 = vand.u32 %v1991, 4294901760
    %v1993 = vsub.f32 %v1991, %v1992
    %v1994 = vand.u32 %v1993, 4294901760
    %1995 = vmatpush1.msra.mxu0 %v1994
    %1996 = vmatprep.subr.mxu0 0.0
    %v1997 = vand.u32 %v82, 4294901760
    %v1998 = vsub.f32 %v82, %v1997
    %v1999 = vand.u32 %v1998, 4294901760
    %v2000 = vsub.f32 %v1998, %v1999
    %v2001 = vand.u32 %v2000, 4294901760
    %2002 = vmatpush1.msra.mxu0 %v2001
    %2003 = vmatprep.subr.mxu0 0.0
    %v2004 = vand.u32 %v83, 4294901760
    %v2005 = vsub.f32 %v83, %v2004
    %v2006 = vand.u32 %v2005, 4294901760
    %v2007 = vsub.f32 %v2005, %v2006
    %v2008 = vand.u32 %v2007, 4294901760
    %2009 = vmatpush1.msra.mxu0 %v2008
    %2010 = vmatprep.subr.mxu0 0.0
    %v2011 = vand.u32 %v84, 4294901760
    %v2012 = vsub.f32 %v84, %v2011
    %v2013 = vand.u32 %v2012, 4294901760
    %v2014 = vsub.f32 %v2012, %v2013
    %v2015 = vand.u32 %v2014, 4294901760
    %2016 = vmatpush1.msra.mxu0 %v2015
    %2017 = vmatprep.subr.mxu0 0.0
    %v2018 = vand.u32 %v85, 4294901760
    %v2019 = vsub.f32 %v85, %v2018
    %v2020 = vand.u32 %v2019, 4294901760
    %v2021 = vsub.f32 %v2019, %v2020
    %v2022 = vand.u32 %v2021, 4294901760
    %2023 = vmatpush1.msra.mxu0 %v2022
    %2024 = vmatprep.subr.mxu0 0.0
    %v2025 = vand.u32 %v86, 4294901760
    %v2026 = vsub.f32 %v86, %v2025
    %v2027 = vand.u32 %v2026, 4294901760
    %v2028 = vsub.f32 %v2026, %v2027
    %v2029 = vand.u32 %v2028, 4294901760
    %2030 = vmatpush1.msra.mxu0 %v2029
    %2031 = vmatprep.subr.mxu0 0.0
    %v2032 = vand.u32 %v87, 4294901760
    %v2033 = vsub.f32 %v87, %v2032
    %v2034 = vand.u32 %v2033, 4294901760
    %v2035 = vsub.f32 %v2033, %v2034
    %v2036 = vand.u32 %v2035, 4294901760
    %2037 = vmatpush1.msra.mxu0 %v2036
    %2038 = vmatprep.subr.mxu0 0.0
    %v2039 = vand.u32 %v88, 4294901760
    %v2040 = vsub.f32 %v88, %v2039
    %v2041 = vand.u32 %v2040, 4294901760
    %v2042 = vsub.f32 %v2040, %v2041
    %v2043 = vand.u32 %v2042, 4294901760
    %2044 = vmatpush1.msra.mxu0 %v2043
    %2045 = vmatprep.subr.mxu0 0.0
    %v2046 = vand.u32 %v89, 4294901760
    %v2047 = vsub.f32 %v89, %v2046
    %v2048 = vand.u32 %v2047, 4294901760
    %v2049 = vsub.f32 %v2047, %v2048
    %v2050 = vand.u32 %v2049, 4294901760
    %2051 = vmatpush1.msra.mxu0 %v2050
    %2052 = vmatprep.subr.mxu0 0.0
    %v2053 = vand.u32 %v90, 4294901760
    %v2054 = vsub.f32 %v90, %v2053
    %v2055 = vand.u32 %v2054, 4294901760
    %v2056 = vsub.f32 %v2054, %v2055
    %v2057 = vand.u32 %v2056, 4294901760
    %2058 = vmatpush1.msra.mxu0 %v2057
    %2059 = vmatprep.subr.mxu0 0.0
    %v2060 = vand.u32 %v91, 4294901760
    %v2061 = vsub.f32 %v91, %v2060
    %v2062 = vand.u32 %v2061, 4294901760
    %v2063 = vsub.f32 %v2061, %v2062
    %v2064 = vand.u32 %v2063, 4294901760
    %2065 = vmatpush1.msra.mxu0 %v2064
    %2066 = vmatprep.subr.mxu0 0.0
    %v2067 = vand.u32 %v92, 4294901760
    %v2068 = vsub.f32 %v92, %v2067
    %v2069 = vand.u32 %v2068, 4294901760
    %v2070 = vsub.f32 %v2068, %v2069
    %v2071 = vand.u32 %v2070, 4294901760
    %2072 = vmatpush1.msra.mxu0 %v2071
    %2073 = vmatprep.subr.mxu0 0.0
    %v2074 = vand.u32 %v93, 4294901760
    %v2075 = vsub.f32 %v93, %v2074
    %v2076 = vand.u32 %v2075, 4294901760
    %v2077 = vsub.f32 %v2075, %v2076
    %v2078 = vand.u32 %v2077, 4294901760
    %2079 = vmatpush1.msra.mxu0 %v2078
    %2080 = vmatprep.subr.mxu0 0.0
    %v2081 = vand.u32 %v94, 4294901760
    %v2082 = vsub.f32 %v94, %v2081
    %v2083 = vand.u32 %v2082, 4294901760
    %v2084 = vsub.f32 %v2082, %v2083
    %v2085 = vand.u32 %v2084, 4294901760
    %2086 = vmatpush1.msra.mxu0 %v2085
    %2087 = vmatprep.subr.mxu0 0.0
    %v2088 = vand.u32 %v95, 4294901760
    %v2089 = vsub.f32 %v95, %v2088
    %v2090 = vand.u32 %v2089, 4294901760
    %v2091 = vsub.f32 %v2089, %v2090
    %v2092 = vand.u32 %v2091, 4294901760
    %2093 = vmatpush1.msra.mxu0 %v2092
    %2094 = vmatprep.subr.mxu0 0.0
    %v2095 = vand.u32 %v96, 4294901760
    %v2096 = vsub.f32 %v96, %v2095
    %v2097 = vand.u32 %v2096, 4294901760
    %v2098 = vsub.f32 %v2096, %v2097
    %v2099 = vand.u32 %v2098, 4294901760
    %2100 = vmatpush1.msra.mxu0 %v2099
    %2101 = vmatprep.subr.mxu0 0.0
    %v2102 = vand.u32 %v97, 4294901760
    %v2103 = vsub.f32 %v97, %v2102
    %v2104 = vand.u32 %v2103, 4294901760
    %v2105 = vsub.f32 %v2103, %v2104
    %v2106 = vand.u32 %v2105, 4294901760
    %2107 = vmatpush1.msra.mxu0 %v2106
    %2108 = vmatprep.subr.mxu0 0.0
    %v2109 = vand.u32 %v98, 4294901760
    %v2110 = vsub.f32 %v98, %v2109
    %v2111 = vand.u32 %v2110, 4294901760
    %v2112 = vsub.f32 %v2110, %v2111
    %v2113 = vand.u32 %v2112, 4294901760
    %2114 = vmatpush1.msra.mxu0 %v2113
    %2115 = vmatprep.subr.mxu0 0.0
    %v2116 = vand.u32 %v99, 4294901760
    %v2117 = vsub.f32 %v99, %v2116
    %v2118 = vand.u32 %v2117, 4294901760
    %v2119 = vsub.f32 %v2117, %v2118
    %v2120 = vand.u32 %v2119, 4294901760
    %2121 = vmatpush1.msra.mxu0 %v2120
    %2122 = vmatprep.subr.mxu0 0.0
    %v2123 = vand.u32 %v100, 4294901760
    %v2124 = vsub.f32 %v100, %v2123
    %v2125 = vand.u32 %v2124, 4294901760
    %v2126 = vsub.f32 %v2124, %v2125
    %v2127 = vand.u32 %v2126, 4294901760
    %2128 = vmatpush1.msra.mxu0 %v2127
    %2129 = vmatprep.subr.mxu0 0.0
    %v2130 = vand.u32 %v101, 4294901760
    %v2131 = vsub.f32 %v101, %v2130
    %v2132 = vand.u32 %v2131, 4294901760
    %v2133 = vsub.f32 %v2131, %v2132
    %v2134 = vand.u32 %v2133, 4294901760
    %2135 = vmatpush1.msra.mxu0 %v2134
    %2136 = vmatprep.subr.mxu0 0.0
    %v2137 = vand.u32 %v102, 4294901760
    %v2138 = vsub.f32 %v102, %v2137
    %v2139 = vand.u32 %v2138, 4294901760
    %v2140 = vsub.f32 %v2138, %v2139
    %v2141 = vand.u32 %v2140, 4294901760
    %2142 = vmatpush1.msra.mxu0 %v2141
    %2143 = vmatprep.subr.mxu0 0.0
    %v2144 = vand.u32 %v103, 4294901760
    %v2145 = vsub.f32 %v103, %v2144
    %v2146 = vand.u32 %v2145, 4294901760
    %v2147 = vsub.f32 %v2145, %v2146
    %v2148 = vand.u32 %v2147, 4294901760
    %2149 = vmatpush1.msra.mxu0 %v2148
    %2150 = vmatprep.subr.mxu0 0.0
    %v2151 = vand.u32 %v104, 4294901760
    %v2152 = vsub.f32 %v104, %v2151
    %v2153 = vand.u32 %v2152, 4294901760
    %v2154 = vsub.f32 %v2152, %v2153
    %v2155 = vand.u32 %v2154, 4294901760
    %2156 = vmatpush1.msra.mxu0 %v2155
    %2157 = vmatprep.subr.mxu0 0.0
    %v2158 = vand.u32 %v105, 4294901760
    %v2159 = vsub.f32 %v105, %v2158
    %v2160 = vand.u32 %v2159, 4294901760
    %v2161 = vsub.f32 %v2159, %v2160
    %v2162 = vand.u32 %v2161, 4294901760
    %2163 = vmatpush1.msra.mxu0 %v2162
    %2164 = vmatprep.subr.mxu0 0.0
    %v2165 = vand.u32 %v106, 4294901760
    %v2166 = vsub.f32 %v106, %v2165
    %v2167 = vand.u32 %v2166, 4294901760
    %v2168 = vsub.f32 %v2166, %v2167
    %v2169 = vand.u32 %v2168, 4294901760
    %2170 = vmatpush1.msra.mxu0 %v2169
    %2171 = vmatprep.subr.mxu0 0.0
    %v2172 = vand.u32 %v107, 4294901760
    %v2173 = vsub.f32 %v107, %v2172
    %v2174 = vand.u32 %v2173, 4294901760
    %v2175 = vsub.f32 %v2173, %v2174
    %v2176 = vand.u32 %v2175, 4294901760
    %2177 = vmatpush1.msra.mxu0 %v2176
    %2178 = vmatprep.subr.mxu0 0.0
    %v2179 = vand.u32 %v108, 4294901760
    %v2180 = vsub.f32 %v108, %v2179
    %v2181 = vand.u32 %v2180, 4294901760
    %v2182 = vsub.f32 %v2180, %v2181
    %v2183 = vand.u32 %v2182, 4294901760
    %2184 = vmatpush1.msra.mxu0 %v2183
    %2185 = vmatprep.subr.mxu0 0.0
    %v2186 = vand.u32 %v109, 4294901760
    %v2187 = vsub.f32 %v109, %v2186
    %v2188 = vand.u32 %v2187, 4294901760
    %v2189 = vsub.f32 %v2187, %v2188
    %v2190 = vand.u32 %v2189, 4294901760
    %2191 = vmatpush1.msra.mxu0 %v2190
    %2192 = vmatprep.subr.mxu0 0.0
    %v2193 = vand.u32 %v110, 4294901760
    %v2194 = vsub.f32 %v110, %v2193
    %v2195 = vand.u32 %v2194, 4294901760
    %v2196 = vsub.f32 %v2194, %v2195
    %v2197 = vand.u32 %v2196, 4294901760
    %2198 = vmatpush1.msra.mxu0 %v2197
    %2199 = vmatprep.subr.mxu0 0.0
    %v2200 = vand.u32 %v111, 4294901760
    %v2201 = vsub.f32 %v111, %v2200
    %v2202 = vand.u32 %v2201, 4294901760
    %v2203 = vsub.f32 %v2201, %v2202
    %v2204 = vand.u32 %v2203, 4294901760
    %2205 = vmatpush1.msra.mxu0 %v2204
    %2206 = vmatprep.subr.mxu0 0.0
    %v2207 = vand.u32 %v112, 4294901760
    %v2208 = vsub.f32 %v112, %v2207
    %v2209 = vand.u32 %v2208, 4294901760
    %v2210 = vsub.f32 %v2208, %v2209
    %v2211 = vand.u32 %v2210, 4294901760
    %2212 = vmatpush1.msra.mxu0 %v2211
    %v2213 = vand.u32 %v146, 4294901760
    %2214 = vmatprep.mubr.f32.mxu0 %v2213
    %v2215 = vand.u32 %v145, 4294901760
    %2216 = vmatmul.mubr.f32.gmra.mrb[0].mxu0 %v2215
    %v2217 = vpop.f32.mrb[0].mxu0
    %v2218 = vadd.f32 %v1986, %v2217
    %v2219 = vpop.f32.mrb[0].mxu0
    %2220 = vdwg.mxu0
    %2221 = vmatprep.subr.mxu0 0.0
    %v2222 = vand.u32 %v81, 4294901760
    %v2223 = vsub.f32 %v81, %v2222
    %2224 = vmatpush1.msra.mxu0 %v2223
    %2225 = vmatprep.subr.mxu0 0.0
    %v2226 = vand.u32 %v82, 4294901760
    %v2227 = vsub.f32 %v82, %v2226
    %2228 = vmatpush1.msra.mxu0 %v2227
    %2229 = vmatprep.subr.mxu0 0.0
    %v2230 = vand.u32 %v83, 4294901760
    %v2231 = vsub.f32 %v83, %v2230
    %2232 = vmatpush1.msra.mxu0 %v2231
    %2233 = vmatprep.subr.mxu0 0.0
    %v2234 = vand.u32 %v84, 4294901760
    %v2235 = vsub.f32 %v84, %v2234
    %2236 = vmatpush1.msra.mxu0 %v2235
    %2237 = vmatprep.subr.mxu0 0.0
    %v2238 = vand.u32 %v85, 4294901760
    %v2239 = vsub.f32 %v85, %v2238
    %2240 = vmatpush1.msra.mxu0 %v2239
    %2241 = vmatprep.subr.mxu0 0.0
    %v2242 = vand.u32 %v86, 4294901760
    %v2243 = vsub.f32 %v86, %v2242
    %2244 = vmatpush1.msra.mxu0 %v2243
    %2245 = vmatprep.subr.mxu0 0.0
    %v2246 = vand.u32 %v87, 4294901760
    %v2247 = vsub.f32 %v87, %v2246
    %2248 = vmatpush1.msra.mxu0 %v2247
    %2249 = vmatprep.subr.mxu0 0.0
    %v2250 = vand.u32 %v88, 4294901760
    %v2251 = vsub.f32 %v88, %v2250
    %2252 = vmatpush1.msra.mxu0 %v2251
    %2253 = vmatprep.subr.mxu0 0.0
    %v2254 = vand.u32 %v89, 4294901760
    %v2255 = vsub.f32 %v89, %v2254
    %2256 = vmatpush1.msra.mxu0 %v2255
    %2257 = vmatprep.subr.mxu0 0.0
    %v2258 = vand.u32 %v90, 4294901760
    %v2259 = vsub.f32 %v90, %v2258
    %2260 = vmatpush1.msra.mxu0 %v2259
    %2261 = vmatprep.subr.mxu0 0.0
    %v2262 = vand.u32 %v91, 4294901760
    %v2263 = vsub.f32 %v91, %v2262
    %2264 = vmatpush1.msra.mxu0 %v2263
    %2265 = vmatprep.subr.mxu0 0.0
    %v2266 = vand.u32 %v92, 4294901760
    %v2267 = vsub.f32 %v92, %v2266
    %2268 = vmatpush1.msra.mxu0 %v2267
    %2269 = vmatprep.subr.mxu0 0.0
    %v2270 = vand.u32 %v93, 4294901760
    %v2271 = vsub.f32 %v93, %v2270
    %2272 = vmatpush1.msra.mxu0 %v2271
    %2273 = vmatprep.subr.mxu0 0.0
    %v2274 = vand.u32 %v94, 4294901760
    %v2275 = vsub.f32 %v94, %v2274
    %2276 = vmatpush1.msra.mxu0 %v2275
    %2277 = vmatprep.subr.mxu0 0.0
    %v2278 = vand.u32 %v95, 4294901760
    %v2279 = vsub.f32 %v95, %v2278
    %2280 = vmatpush1.msra.mxu0 %v2279
    %2281 = vmatprep.subr.mxu0 0.0
    %v2282 = vand.u32 %v96, 4294901760
    %v2283 = vsub.f32 %v96, %v2282
    %2284 = vmatpush1.msra.mxu0 %v2283
    %2285 = vmatprep.subr.mxu0 0.0
    %v2286 = vand.u32 %v97, 4294901760
    %v2287 = vsub.f32 %v97, %v2286
    %2288 = vmatpush1.msra.mxu0 %v2287
    %2289 = vmatprep.subr.mxu0 0.0
    %v2290 = vand.u32 %v98, 4294901760
    %v2291 = vsub.f32 %v98, %v2290
    %2292 = vmatpush1.msra.mxu0 %v2291
    %2293 = vmatprep.subr.mxu0 0.0
    %v2294 = vand.u32 %v99, 4294901760
    %v2295 = vsub.f32 %v99, %v2294
    %2296 = vmatpush1.msra.mxu0 %v2295
    %2297 = vmatprep.subr.mxu0 0.0
    %v2298 = vand.u32 %v100, 4294901760
    %v2299 = vsub.f32 %v100, %v2298
    %2300 = vmatpush1.msra.mxu0 %v2299
    %2301 = vmatprep.subr.mxu0 0.0
    %v2302 = vand.u32 %v101, 4294901760
    %v2303 = vsub.f32 %v101, %v2302
    %2304 = vmatpush1.msra.mxu0 %v2303
    %2305 = vmatprep.subr.mxu0 0.0
    %v2306 = vand.u32 %v102, 4294901760
    %v2307 = vsub.f32 %v102, %v2306
    %2308 = vmatpush1.msra.mxu0 %v2307
    %2309 = vmatprep.subr.mxu0 0.0
    %v2310 = vand.u32 %v103, 4294901760
    %v2311 = vsub.f32 %v103, %v2310
    %2312 = vmatpush1.msra.mxu0 %v2311
    %2313 = vmatprep.subr.mxu0 0.0
    %v2314 = vand.u32 %v104, 4294901760
    %v2315 = vsub.f32 %v104, %v2314
    %2316 = vmatpush1.msra.mxu0 %v2315
    %2317 = vmatprep.subr.mxu0 0.0
    %v2318 = vand.u32 %v105, 4294901760
    %v2319 = vsub.f32 %v105, %v2318
    %2320 = vmatpush1.msra.mxu0 %v2319
    %2321 = vmatprep.subr.mxu0 0.0
    %v2322 = vand.u32 %v106, 4294901760
    %v2323 = vsub.f32 %v106, %v2322
    %2324 = vmatpush1.msra.mxu0 %v2323
    %2325 = vmatprep.subr.mxu0 0.0
    %v2326 = vand.u32 %v107, 4294901760
    %v2327 = vsub.f32 %v107, %v2326
    %2328 = vmatpush1.msra.mxu0 %v2327
    %2329 = vmatprep.subr.mxu0 0.0
    %v2330 = vand.u32 %v108, 4294901760
    %v2331 = vsub.f32 %v108, %v2330
    %2332 = vmatpush1.msra.mxu0 %v2331
    %2333 = vmatprep.subr.mxu0 0.0
    %v2334 = vand.u32 %v109, 4294901760
    %v2335 = vsub.f32 %v109, %v2334
    %2336 = vmatpush1.msra.mxu0 %v2335
    %2337 = vmatprep.subr.mxu0 0.0
    %v2338 = vand.u32 %v110, 4294901760
    %v2339 = vsub.f32 %v110, %v2338
    %2340 = vmatpush1.msra.mxu0 %v2339
    %2341 = vmatprep.subr.mxu0 0.0
    %v2342 = vand.u32 %v111, 4294901760
    %v2343 = vsub.f32 %v111, %v2342
    %2344 = vmatpush1.msra.mxu0 %v2343
    %2345 = vmatprep.subr.mxu0 0.0
    %v2346 = vand.u32 %v112, 4294901760
    %v2347 = vsub.f32 %v112, %v2346
    %2348 = vmatpush1.msra.mxu0 %v2347
    %v2349 = vand.u32 %v146, 4294901760
    %v2350 = vsub.f32 %v146, %v2349
    %2351 = vmatprep.mubr.f32.mxu0 %v2350
    %v2352 = vand.u32 %v145, 4294901760
    %v2353 = vsub.f32 %v145, %v2352
    %2354 = vmatmul.mubr.f32.gmra.mrb[0].mxu0 %v2353
    %v2355 = vpop.f32.mrb[0].mxu0
    %v2356 = vadd.f32 %v2218, %v2355
    %v2357 = vpop.f32.mrb[0].mxu0
    %2358 = vdwg.mxu0
    %2359 = vmatprep.subr.mxu0 0.0
    %v2360 = vand.u32 %v81, 4294901760
    %2361 = vmatpush1.msra.mxu0 %v2360
    %2362 = vmatprep.subr.mxu0 0.0
    %v2363 = vand.u32 %v82, 4294901760
    %2364 = vmatpush1.msra.mxu0 %v2363
    %2365 = vmatprep.subr.mxu0 0.0
    %v2366 = vand.u32 %v83, 4294901760
    %2367 = vmatpush1.msra.mxu0 %v2366
    %2368 = vmatprep.subr.mxu0 0.0
    %v2369 = vand.u32 %v84, 4294901760
    %2370 = vmatpush1.msra.mxu0 %v2369
    %2371 = vmatprep.subr.mxu0 0.0
    %v2372 = vand.u32 %v85, 4294901760
    %2373 = vmatpush1.msra.mxu0 %v2372
    %2374 = vmatprep.subr.mxu0 0.0
    %v2375 = vand.u32 %v86, 4294901760
    %2376 = vmatpush1.msra.mxu0 %v2375
    %2377 = vmatprep.subr.mxu0 0.0
    %v2378 = vand.u32 %v87, 4294901760
    %2379 = vmatpush1.msra.mxu0 %v2378
    %2380 = vmatprep.subr.mxu0 0.0
    %v2381 = vand.u32 %v88, 4294901760
    %2382 = vmatpush1.msra.mxu0 %v2381
    %2383 = vmatprep.subr.mxu0 0.0
    %v2384 = vand.u32 %v89, 4294901760
    %2385 = vmatpush1.msra.mxu0 %v2384
    %2386 = vmatprep.subr.mxu0 0.0
    %v2387 = vand.u32 %v90, 4294901760
    %2388 = vmatpush1.msra.mxu0 %v2387
    %2389 = vmatprep.subr.mxu0 0.0
    %v2390 = vand.u32 %v91, 4294901760
    %2391 = vmatpush1.msra.mxu0 %v2390
    %2392 = vmatprep.subr.mxu0 0.0
    %v2393 = vand.u32 %v92, 4294901760
    %2394 = vmatpush1.msra.mxu0 %v2393
    %2395 = vmatprep.subr.mxu0 0.0
    %v2396 = vand.u32 %v93, 4294901760
    %2397 = vmatpush1.msra.mxu0 %v2396
    %2398 = vmatprep.subr.mxu0 0.0
    %v2399 = vand.u32 %v94, 4294901760
    %2400 = vmatpush1.msra.mxu0 %v2399
    %2401 = vmatprep.subr.mxu0 0.0
    %v2402 = vand.u32 %v95, 4294901760
    %2403 = vmatpush1.msra.mxu0 %v2402
    %2404 = vmatprep.subr.mxu0 0.0
    %v2405 = vand.u32 %v96, 4294901760
    %2406 = vmatpush1.msra.mxu0 %v2405
    %2407 = vmatprep.subr.mxu0 0.0
    %v2408 = vand.u32 %v97, 4294901760
    %2409 = vmatpush1.msra.mxu0 %v2408
    %2410 = vmatprep.subr.mxu0 0.0
    %v2411 = vand.u32 %v98, 4294901760
    %2412 = vmatpush1.msra.mxu0 %v2411
    %2413 = vmatprep.subr.mxu0 0.0
    %v2414 = vand.u32 %v99, 4294901760
    %2415 = vmatpush1.msra.mxu0 %v2414
    %2416 = vmatprep.subr.mxu0 0.0
    %v2417 = vand.u32 %v100, 4294901760
    %2418 = vmatpush1.msra.mxu0 %v2417
    %2419 = vmatprep.subr.mxu0 0.0
    %v2420 = vand.u32 %v101, 4294901760
    %2421 = vmatpush1.msra.mxu0 %v2420
    %2422 = vmatprep.subr.mxu0 0.0
    %v2423 = vand.u32 %v102, 4294901760
    %2424 = vmatpush1.msra.mxu0 %v2423
    %2425 = vmatprep.subr.mxu0 0.0
    %v2426 = vand.u32 %v103, 4294901760
    %2427 = vmatpush1.msra.mxu0 %v2426
    %2428 = vmatprep.subr.mxu0 0.0
    %v2429 = vand.u32 %v104, 4294901760
    %2430 = vmatpush1.msra.mxu0 %v2429
    %2431 = vmatprep.subr.mxu0 0.0
    %v2432 = vand.u32 %v105, 4294901760
    %2433 = vmatpush1.msra.mxu0 %v2432
    %2434 = vmatprep.subr.mxu0 0.0
    %v2435 = vand.u32 %v106, 4294901760
    %2436 = vmatpush1.msra.mxu0 %v2435
    %2437 = vmatprep.subr.mxu0 0.0
    %v2438 = vand.u32 %v107, 4294901760
    %2439 = vmatpush1.msra.mxu0 %v2438
    %2440 = vmatprep.subr.mxu0 0.0
    %v2441 = vand.u32 %v108, 4294901760
    %2442 = vmatpush1.msra.mxu0 %v2441
    %2443 = vmatprep.subr.mxu0 0.0
    %v2444 = vand.u32 %v109, 4294901760
    %2445 = vmatpush1.msra.mxu0 %v2444
    %2446 = vmatprep.subr.mxu0 0.0
    %v2447 = vand.u32 %v110, 4294901760
    %2448 = vmatpush1.msra.mxu0 %v2447
    %2449 = vmatprep.subr.mxu0 0.0
    %v2450 = vand.u32 %v111, 4294901760
    %2451 = vmatpush1.msra.mxu0 %v2450
    %2452 = vmatprep.subr.mxu0 0.0
    %v2453 = vand.u32 %v112, 4294901760
    %2454 = vmatpush1.msra.mxu0 %v2453
    %v2455 = vand.u32 %v146, 4294901760
    %v2456 = vsub.f32 %v146, %v2455
    %v2457 = vand.u32 %v2456, 4294901760
    %2458 = vmatprep.mubr.f32.mxu0 %v2457
    %v2459 = vand.u32 %v145, 4294901760
    %v2460 = vsub.f32 %v145, %v2459
    %v2461 = vand.u32 %v2460, 4294901760
    %2462 = vmatmul.mubr.f32.gmra.mrb[0].mxu0 %v2461
    %v2463 = vpop.f32.mrb[0].mxu0
    %v2464 = vadd.f32 %v2356, %v2463
    %v2465 = vpop.f32.mrb[0].mxu0
    %2466 = vdwg.mxu0
    %2467 = vmatprep.subr.mxu0 0.0
    %v2468 = vand.u32 %v81, 4294901760
    %v2469 = vsub.f32 %v81, %v2468
    %v2470 = vand.u32 %v2469, 4294901760
    %2471 = vmatpush1.msra.mxu0 %v2470
    %2472 = vmatprep.subr.mxu0 0.0
    %v2473 = vand.u32 %v82, 4294901760
    %v2474 = vsub.f32 %v82, %v2473
    %v2475 = vand.u32 %v2474, 4294901760
    %2476 = vmatpush1.msra.mxu0 %v2475
    %2477 = vmatprep.subr.mxu0 0.0
    %v2478 = vand.u32 %v83, 4294901760
    %v2479 = vsub.f32 %v83, %v2478
    %v2480 = vand.u32 %v2479, 4294901760
    %2481 = vmatpush1.msra.mxu0 %v2480
    %2482 = vmatprep.subr.mxu0 0.0
    %v2483 = vand.u32 %v84, 4294901760
    %v2484 = vsub.f32 %v84, %v2483
    %v2485 = vand.u32 %v2484, 4294901760
    %2486 = vmatpush1.msra.mxu0 %v2485
    %2487 = vmatprep.subr.mxu0 0.0
    %v2488 = vand.u32 %v85, 4294901760
    %v2489 = vsub.f32 %v85, %v2488
    %v2490 = vand.u32 %v2489, 4294901760
    %2491 = vmatpush1.msra.mxu0 %v2490
    %2492 = vmatprep.subr.mxu0 0.0
    %v2493 = vand.u32 %v86, 4294901760
    %v2494 = vsub.f32 %v86, %v2493
    %v2495 = vand.u32 %v2494, 4294901760
    %2496 = vmatpush1.msra.mxu0 %v2495
    %2497 = vmatprep.subr.mxu0 0.0
    %v2498 = vand.u32 %v87, 4294901760
    %v2499 = vsub.f32 %v87, %v2498
    %v2500 = vand.u32 %v2499, 4294901760
    %2501 = vmatpush1.msra.mxu0 %v2500
    %2502 = vmatprep.subr.mxu0 0.0
    %v2503 = vand.u32 %v88, 4294901760
    %v2504 = vsub.f32 %v88, %v2503
    %v2505 = vand.u32 %v2504, 4294901760
    %2506 = vmatpush1.msra.mxu0 %v2505
    %2507 = vmatprep.subr.mxu0 0.0
    %v2508 = vand.u32 %v89, 4294901760
    %v2509 = vsub.f32 %v89, %v2508
    %v2510 = vand.u32 %v2509, 4294901760
    %2511 = vmatpush1.msra.mxu0 %v2510
    %2512 = vmatprep.subr.mxu0 0.0
    %v2513 = vand.u32 %v90, 4294901760
    %v2514 = vsub.f32 %v90, %v2513
    %v2515 = vand.u32 %v2514, 4294901760
    %2516 = vmatpush1.msra.mxu0 %v2515
    %2517 = vmatprep.subr.mxu0 0.0
    %v2518 = vand.u32 %v91, 4294901760
    %v2519 = vsub.f32 %v91, %v2518
    %v2520 = vand.u32 %v2519, 4294901760
    %2521 = vmatpush1.msra.mxu0 %v2520
    %2522 = vmatprep.subr.mxu0 0.0
    %v2523 = vand.u32 %v92, 4294901760
    %v2524 = vsub.f32 %v92, %v2523
    %v2525 = vand.u32 %v2524, 4294901760
    %2526 = vmatpush1.msra.mxu0 %v2525
    %2527 = vmatprep.subr.mxu0 0.0
    %v2528 = vand.u32 %v93, 4294901760
    %v2529 = vsub.f32 %v93, %v2528
    %v2530 = vand.u32 %v2529, 4294901760
    %2531 = vmatpush1.msra.mxu0 %v2530
    %2532 = vmatprep.subr.mxu0 0.0
    %v2533 = vand.u32 %v94, 4294901760
    %v2534 = vsub.f32 %v94, %v2533
    %v2535 = vand.u32 %v2534, 4294901760
    %2536 = vmatpush1.msra.mxu0 %v2535
    %2537 = vmatprep.subr.mxu0 0.0
    %v2538 = vand.u32 %v95, 4294901760
    %v2539 = vsub.f32 %v95, %v2538
    %v2540 = vand.u32 %v2539, 4294901760
    %2541 = vmatpush1.msra.mxu0 %v2540
    %2542 = vmatprep.subr.mxu0 0.0
    %v2543 = vand.u32 %v96, 4294901760
    %v2544 = vsub.f32 %v96, %v2543
    %v2545 = vand.u32 %v2544, 4294901760
    %2546 = vmatpush1.msra.mxu0 %v2545
    %2547 = vmatprep.subr.mxu0 0.0
    %v2548 = vand.u32 %v97, 4294901760
    %v2549 = vsub.f32 %v97, %v2548
    %v2550 = vand.u32 %v2549, 4294901760
    %2551 = vmatpush1.msra.mxu0 %v2550
    %2552 = vmatprep.subr.mxu0 0.0
    %v2553 = vand.u32 %v98, 4294901760
    %v2554 = vsub.f32 %v98, %v2553
    %v2555 = vand.u32 %v2554, 4294901760
    %2556 = vmatpush1.msra.mxu0 %v2555
    %2557 = vmatprep.subr.mxu0 0.0
    %v2558 = vand.u32 %v99, 4294901760
    %v2559 = vsub.f32 %v99, %v2558
    %v2560 = vand.u32 %v2559, 4294901760
    %2561 = vmatpush1.msra.mxu0 %v2560
    %2562 = vmatprep.subr.mxu0 0.0
    %v2563 = vand.u32 %v100, 4294901760
    %v2564 = vsub.f32 %v100, %v2563
    %v2565 = vand.u32 %v2564, 4294901760
    %2566 = vmatpush1.msra.mxu0 %v2565
    %2567 = vmatprep.subr.mxu0 0.0
    %v2568 = vand.u32 %v101, 4294901760
    %v2569 = vsub.f32 %v101, %v2568
    %v2570 = vand.u32 %v2569, 4294901760
    %2571 = vmatpush1.msra.mxu0 %v2570
    %2572 = vmatprep.subr.mxu0 0.0
    %v2573 = vand.u32 %v102, 4294901760
    %v2574 = vsub.f32 %v102, %v2573
    %v2575 = vand.u32 %v2574, 4294901760
    %2576 = vmatpush1.msra.mxu0 %v2575
    %2577 = vmatprep.subr.mxu0 0.0
    %v2578 = vand.u32 %v103, 4294901760
    %v2579 = vsub.f32 %v103, %v2578
    %v2580 = vand.u32 %v2579, 4294901760
    %2581 = vmatpush1.msra.mxu0 %v2580
    %2582 = vmatprep.subr.mxu0 0.0
    %v2583 = vand.u32 %v104, 4294901760
    %v2584 = vsub.f32 %v104, %v2583
    %v2585 = vand.u32 %v2584, 4294901760
    %2586 = vmatpush1.msra.mxu0 %v2585
    %2587 = vmatprep.subr.mxu0 0.0
    %v2588 = vand.u32 %v105, 4294901760
    %v2589 = vsub.f32 %v105, %v2588
    %v2590 = vand.u32 %v2589, 4294901760
    %2591 = vmatpush1.msra.mxu0 %v2590
    %2592 = vmatprep.subr.mxu0 0.0
    %v2593 = vand.u32 %v106, 4294901760
    %v2594 = vsub.f32 %v106, %v2593
    %v2595 = vand.u32 %v2594, 4294901760
    %2596 = vmatpush1.msra.mxu0 %v2595
    %2597 = vmatprep.subr.mxu0 0.0
    %v2598 = vand.u32 %v107, 4294901760
    %v2599 = vsub.f32 %v107, %v2598
    %v2600 = vand.u32 %v2599, 4294901760
    %2601 = vmatpush1.msra.mxu0 %v2600
    %2602 = vmatprep.subr.mxu0 0.0
    %v2603 = vand.u32 %v108, 4294901760
    %v2604 = vsub.f32 %v108, %v2603
    %v2605 = vand.u32 %v2604, 4294901760
    %2606 = vmatpush1.msra.mxu0 %v2605
    %2607 = vmatprep.subr.mxu0 0.0
    %v2608 = vand.u32 %v109, 4294901760
    %v2609 = vsub.f32 %v109, %v2608
    %v2610 = vand.u32 %v2609, 4294901760
    %2611 = vmatpush1.msra.mxu0 %v2610
    %2612 = vmatprep.subr.mxu0 0.0
    %v2613 = vand.u32 %v110, 4294901760
    %v2614 = vsub.f32 %v110, %v2613
    %v2615 = vand.u32 %v2614, 4294901760
    %2616 = vmatpush1.msra.mxu0 %v2615
    %2617 = vmatprep.subr.mxu0 0.0
    %v2618 = vand.u32 %v111, 4294901760
    %v2619 = vsub.f32 %v111, %v2618
    %v2620 = vand.u32 %v2619, 4294901760
    %2621 = vmatpush1.msra.mxu0 %v2620
    %2622 = vmatprep.subr.mxu0 0.0
    %v2623 = vand.u32 %v112, 4294901760
    %v2624 = vsub.f32 %v112, %v2623
    %v2625 = vand.u32 %v2624, 4294901760
    %2626 = vmatpush1.msra.mxu0 %v2625
    %v2627 = vand.u32 %v146, 4294901760
    %2628 = vmatprep.mubr.f32.mxu0 %v2627
    %v2629 = vand.u32 %v145, 4294901760
    %2630 = vmatmul.mubr.f32.gmra.mrb[0].mxu0 %v2629
    %v2631 = vpop.f32.mrb[0].mxu0
    %v2632 = vadd.f32 %v2464, %v2631
    %v2633 = vpop.f32.mrb[0].mxu0
    %2634 = vdwg.mxu0
    %2635 = vmatprep.subr.mxu0 0.0
    %v2636 = vand.u32 %v81, 4294901760
    %2637 = vmatpush1.msra.mxu0 %v2636
    %2638 = vmatprep.subr.mxu0 0.0
    %v2639 = vand.u32 %v82, 4294901760
    %2640 = vmatpush1.msra.mxu0 %v2639
    %2641 = vmatprep.subr.mxu0 0.0
    %v2642 = vand.u32 %v83, 4294901760
    %2643 = vmatpush1.msra.mxu0 %v2642
    %2644 = vmatprep.subr.mxu0 0.0
    %v2645 = vand.u32 %v84, 4294901760
    %2646 = vmatpush1.msra.mxu0 %v2645
    %2647 = vmatprep.subr.mxu0 0.0
    %v2648 = vand.u32 %v85, 4294901760
    %2649 = vmatpush1.msra.mxu0 %v2648
    %2650 = vmatprep.subr.mxu0 0.0
    %v2651 = vand.u32 %v86, 4294901760
    %2652 = vmatpush1.msra.mxu0 %v2651
    %2653 = vmatprep.subr.mxu0 0.0
    %v2654 = vand.u32 %v87, 4294901760
    %2655 = vmatpush1.msra.mxu0 %v2654
    %2656 = vmatprep.subr.mxu0 0.0
    %v2657 = vand.u32 %v88, 4294901760
    %2658 = vmatpush1.msra.mxu0 %v2657
    %2659 = vmatprep.subr.mxu0 0.0
    %v2660 = vand.u32 %v89, 4294901760
    %2661 = vmatpush1.msra.mxu0 %v2660
    %2662 = vmatprep.subr.mxu0 0.0
    %v2663 = vand.u32 %v90, 4294901760
    %2664 = vmatpush1.msra.mxu0 %v2663
    %2665 = vmatprep.subr.mxu0 0.0
    %v2666 = vand.u32 %v91, 4294901760
    %2667 = vmatpush1.msra.mxu0 %v2666
    %2668 = vmatprep.subr.mxu0 0.0
    %v2669 = vand.u32 %v92, 4294901760
    %2670 = vmatpush1.msra.mxu0 %v2669
    %2671 = vmatprep.subr.mxu0 0.0
    %v2672 = vand.u32 %v93, 4294901760
    %2673 = vmatpush1.msra.mxu0 %v2672
    %2674 = vmatprep.subr.mxu0 0.0
    %v2675 = vand.u32 %v94, 4294901760
    %2676 = vmatpush1.msra.mxu0 %v2675
    %2677 = vmatprep.subr.mxu0 0.0
    %v2678 = vand.u32 %v95, 4294901760
    %2679 = vmatpush1.msra.mxu0 %v2678
    %2680 = vmatprep.subr.mxu0 0.0
    %v2681 = vand.u32 %v96, 4294901760
    %2682 = vmatpush1.msra.mxu0 %v2681
    %2683 = vmatprep.subr.mxu0 0.0
    %v2684 = vand.u32 %v97, 4294901760
    %2685 = vmatpush1.msra.mxu0 %v2684
    %2686 = vmatprep.subr.mxu0 0.0
    %v2687 = vand.u32 %v98, 4294901760
    %2688 = vmatpush1.msra.mxu0 %v2687
    %2689 = vmatprep.subr.mxu0 0.0
    %v2690 = vand.u32 %v99, 4294901760
    %2691 = vmatpush1.msra.mxu0 %v2690
    %2692 = vmatprep.subr.mxu0 0.0
    %v2693 = vand.u32 %v100, 4294901760
    %2694 = vmatpush1.msra.mxu0 %v2693
    %2695 = vmatprep.subr.mxu0 0.0
    %v2696 = vand.u32 %v101, 4294901760
    %2697 = vmatpush1.msra.mxu0 %v2696
    %2698 = vmatprep.subr.mxu0 0.0
    %v2699 = vand.u32 %v102, 4294901760
    %2700 = vmatpush1.msra.mxu0 %v2699
    %2701 = vmatprep.subr.mxu0 0.0
    %v2702 = vand.u32 %v103, 4294901760
    %2703 = vmatpush1.msra.mxu0 %v2702
    %2704 = vmatprep.subr.mxu0 0.0
    %v2705 = vand.u32 %v104, 4294901760
    %2706 = vmatpush1.msra.mxu0 %v2705
    %2707 = vmatprep.subr.mxu0 0.0
    %v2708 = vand.u32 %v105, 4294901760
    %2709 = vmatpush1.msra.mxu0 %v2708
    %2710 = vmatprep.subr.mxu0 0.0
    %v2711 = vand.u32 %v106, 4294901760
    %2712 = vmatpush1.msra.mxu0 %v2711
    %2713 = vmatprep.subr.mxu0 0.0
    %v2714 = vand.u32 %v107, 4294901760
    %2715 = vmatpush1.msra.mxu0 %v2714
    %2716 = vmatprep.subr.mxu0 0.0
    %v2717 = vand.u32 %v108, 4294901760
    %2718 = vmatpush1.msra.mxu0 %v2717
    %2719 = vmatprep.subr.mxu0 0.0
    %v2720 = vand.u32 %v109, 4294901760
    %2721 = vmatpush1.msra.mxu0 %v2720
    %2722 = vmatprep.subr.mxu0 0.0
    %v2723 = vand.u32 %v110, 4294901760
    %2724 = vmatpush1.msra.mxu0 %v2723
    %2725 = vmatprep.subr.mxu0 0.0
    %v2726 = vand.u32 %v111, 4294901760
    %2727 = vmatpush1.msra.mxu0 %v2726
    %2728 = vmatprep.subr.mxu0 0.0
    %v2729 = vand.u32 %v112, 4294901760
    %2730 = vmatpush1.msra.mxu0 %v2729
    %v2731 = vand.u32 %v146, 4294901760
    %2732 = vmatprep.mubr.f32.mxu0 %v2731
    %v2733 = vand.u32 %v145, 4294901760
    %2734 = vmatmul.mubr.f32.gmra.mrb[0].mxu0 %v2733
    %v2735 = vpop.f32.mrb[0].mxu0
    %v2736 = vadd.f32 %v2632, %v2735
    %v2737 = vpop.f32.mrb[0].mxu0
    %2738 = vdwg.mxu0
    %vm2739 = vcmask 74752
    %v2740 = vsel %vm2739, %v2736, -inf
    %2741 = vmax.xlane.f32.xlu0 %v2740
    %v2742 = vpop.xlane.xlu0 %2741
    %v2743 = vsub.f32 %v2736, %v2742
    %v2744 = vmul.f32 %v2743, 1.442695
    %v2745 = vpow.pop %v2744
    %v2746 = vsel %vm2739, %v2745, 0.0
    %2747 = vadd.xlane.f32.xlu0 %v2746
    %v2748 = vpop.xlane.xlu0 %2747
    %v2749 = vrcp.pop %v2748
    %v2750 = vmul.f32 %v2745, %v2749
    %2751 = vst.msk [vmem:[#allocation2] sm:$0x3] %vm2739, %v2750
    // Predicated region
    $region14: #{fakenet_forward.1} parent=1 // pred_check
      _
    $region15: #{fakenet_forward.1} parent=1 // pred_check_branch
      %2753 = sbr.rel (0) target = $region17
    $region16: #{fakenet_forward.1} parent=1 // pred_region
      %s2755 = ssub.s32 32, 32
      %2756 = vsyncadd [#allocation3], %s2755
      %s2758 = sshll.u32 [#allocation2], 4
      %s2759 = int_to_ptr.vmem [resolvable:$true] %s2758
      %2761 = dma.vmem_to_hbm [thread:$0]  %s2759, 32, %s3, [#allocation3]
    $region17: #{fakenet_forward.1} parent=1 // pred_fallthru
      _
    // Predicated region
    $region18: #{fakenet_forward.1} parent=1 // pred_check
      _
    $region19: #{fakenet_forward.1} parent=1 // pred_check_branch
      %2763 = sbr.rel (0) target = $region21
    $region20: #{fakenet_forward.1} parent=1 // pred_region
      %2764 = dma.done [#allocation3], 32
    $region21: #{fakenet_forward.1} parent=1 // pred_fallthru
      _
    %2765 = vsyncpa [#allocation3], 1

</llo_original>
